<compile_context>
chip_gen: v5e
topology: v5e:2x2
jax: 0.10.0
libtpu: 0.0.40
codegen_flags: <defaults>
</compile_context>

<pallas_src>
import functools

import jax
import jax.numpy as jnp
from jax import lax
from jax.experimental import pallas as pl
from jax.experimental.pallas import tpu as pltpu


def _round_up(x, m):
    return ((x + m - 1) // m) * m


# Finite pre-activation sentinel for masked maxes: tanh(_NEG + bias) == -1.0,
# so malformed (e1 > e2) or padded segments cannot inject NaN/Inf into the head.
_NEG = -3.0e38


def _pcnn_kernel(t_valid, x_ref, ep_ref, cw_ref, cb_ref, ow_ref, ob_ref, out_ref):
    x = x_ref[...]                                   # (B, Tp, Kp) bf16
    B, Tp, Kp = x.shape
    Fp = cw_ref.shape[1]

    # Full-width Conv2d == one big MXU matmul over im2col rows (bf16 in, f32 acc).
    s = jnp.dot(x.reshape(B * Tp, Kp), cw_ref[...],
                preferred_element_type=jnp.float32).reshape(B, Tp, Fp)

    # Entity positions (packed: column 0 = e1, column 1 = e2).
    ep = ep_ref[...]
    e1 = ep[:, 0:1].reshape(B, 1, 1)
    e2 = ep[:, 1:2].reshape(B, 1, 1)

    # Single fused pass over T (tile-aligned sublane chunks of 8): three
    # running maxes over the PRE-activation values; bias + tanh are applied
    # after the max (monotone), only on the pooled (B, Fp) tiles.
    neg = jnp.float32(_NEG)
    p1 = jnp.full((B, Fp), neg, jnp.float32)
    p2 = jnp.full((B, Fp), neg, jnp.float32)
    p3 = jnp.full((B, Fp), neg, jnp.float32)
    CH = 8
    for c in range(Tp // CH):                        # static trip count
        t0 = c * CH
        sc = s[:, t0:t0 + CH, :]                     # static, tile-aligned slice
        tt = t0 + lax.broadcasted_iota(jnp.int32, (1, CH, 1), 1)
        valid = tt < t_valid                         # mask out T padding
        m1 = (tt <= e1) & valid                      # [0, e1]
        m2 = (tt >= e1) & (tt <= e2) & valid         # [e1, e2]
        m3 = (tt >= e2) & valid                      # [e2, T-1]
        p1 = jnp.maximum(p1, jnp.max(jnp.where(m1, sc, neg), axis=1))
        p2 = jnp.maximum(p2, jnp.max(jnp.where(m2, sc, neg), axis=1))
        p3 = jnp.maximum(p3, jnp.max(jnp.where(m3, sc, neg), axis=1))

    # Bias + tanh on 3*(B, Fp) only (T/3x fewer EUP pushes than tanh'ing s).
    cb = cb_ref[...]
    h1 = jnp.tanh(p1 + cb).astype(jnp.bfloat16)
    h2 = jnp.tanh(p2 + cb).astype(jnp.bfloat16)
    h3 = jnp.tanh(p3 + cb).astype(jnp.bfloat16)

    # Linear head as three matmuls summed (weights pre-permuted + padded in the
    # wrapper so pool-major segments match torch's filter-major interleave).
    scores = (
        jnp.dot(h1, ow_ref[0], preferred_element_type=jnp.float32)
        + jnp.dot(h2, ow_ref[1], preferred_element_type=jnp.float32)
        + jnp.dot(h3, ow_ref[2], preferred_element_type=jnp.float32)
        + ob_ref[...]
    )                                                # (B, Cp), lane-dense store
    out_ref[...] = scores


def _default_vmem_limit_bytes():
    # Leave headroom below physical VMEM: 64 MiB/TC on v7x, 128 MiB on v5e/v6e.
    try:
        cap = pltpu.get_tpu_info().vmem_capacity_bytes
    except Exception:
        cap = 64 * 1024 * 1024                       # conservative (v7x) fallback
    return min(int(cap * 0.85), 112 * 1024 * 1024)


def _pick_block_b(requested_b, n, t_pad, k_pad, f_pad, c_pad, vmem_limit_bytes):
    # Per-sentence VMEM footprint (bytes).
    per_row = (
        2 * t_pad * k_pad * 2      # x block (bf16), double-buffered
        + t_pad * f_pad * 4        # s = x @ cw matmul result (f32)
        + 2 * 8 * 4                # packed (e1, e2) block, double-buffered
        + 2 * c_pad * 4            # output block (f32), double-buffered
        + 8 * f_pad * 4            # pooled accumulators / chunk temporaries
    )
    fixed = 2 * ((k_pad * f_pad + 3 * f_pad * c_pad) * 2 + (f_pad + c_pad) * 4)
    budget = max(per_row * 8, int(vmem_limit_bytes * 0.6) - fixed)
    b_fit = (budget // per_row) // 8 * 8
    # Prefer >=2 grid steps so the "parallel" axis can shard across v7x's two
    # TensorCores (no-op on single-TC v5e/v6e).
    two_step_cap = _round_up(max(_round_up(n, 8) // 2, 8), 8)
    b = min(requested_b, b_fit, _round_up(n, 8), two_step_cap)
    return max(8, (b // 8) * 8)


def pcnn_scores(x_col, e1, e2, conv_w_mat, conv_b_vec, W_out, b_out,
                *, block_b=256, vmem_limit_bytes=None):
    """x_col: (N, T, K) im2col slab (f32). Returns torch-equivalent scores (N, C)."""
    N, T, K = x_col.shape
    F = conv_w_mat.shape[1]
    C = W_out.shape[0]

    if vmem_limit_bytes is None:
        vmem_limit_bytes = _default_vmem_limit_bytes()

    # Pad K/F/C to full 128-lane vregs and T to a multiple of 16 (bf16 sublane
    # packing) -> lane-dense DMAs, free reshapes; zero-padding K is exact.
    K_pad = _round_up(max(K, 128), 128)
    F_pad = _round_up(max(F, 128), 128)
    C_pad = _round_up(max(C, 128), 128)
    T_pad = _round_up(T, 16)

    B = _pick_block_b(block_b, N, T_pad, K_pad, F_pad, C_pad, vmem_limit_bytes)
    N_pad = _round_up(N, B)

    # --- wrapper-side weight prep (zero-padded, permuted; bf16 matmul inputs) ---
    cw = jnp.zeros((K_pad, F_pad), jnp.bfloat16).at[:K, :F].set(
        conv_w_mat.astype(jnp.bfloat16))
    cb = jnp.zeros((1, F_pad), jnp.float32).at[:, :F].set(conv_b_vec.reshape(1, F))
    # torch feature index = f*3 + p  ->  per-segment weights W[p, f, c]
    w3 = jnp.transpose(W_out.reshape(C, F, 3), (2, 1, 0))            # (3, F, C)
    ow = jnp.zeros((3, F_pad, C_pad), jnp.bfloat16).at[:, :F, :C].set(
        w3.astype(jnp.bfloat16))
    ob = jnp.zeros((1, C_pad), jnp.float32).at[:, :C].set(b_out.reshape(1, C))

    xp = jnp.zeros((N_pad, T_pad, K_pad), jnp.bfloat16).at[:N, :T, :K].set(
        x_col.astype(jnp.bfloat16))
    ep = (jnp.zeros((N_pad, 8), jnp.int32)
          .at[:N, 0].set(e1.astype(jnp.int32))
          .at[:N, 1].set(e2.astype(jnp.int32)))

    in_bytes = (N_pad * T_pad * K_pad * 2 + N_pad * 8 * 4
                + (K_pad * F_pad + 3 * F_pad * C_pad) * 2 + (F_pad + C_pad) * 4)
    out_bytes = N_pad * C_pad * 4
    cost = pl.CostEstimate(
        flops=int(2 * N_pad * T_pad * K_pad * F_pad + 6 * N_pad * F_pad * C_pad),
        transcendentals=int(3 * N_pad * F_pad),
        bytes_accessed=int(in_bytes + out_bytes),
    )

    out = pl.pallas_call(
        functools.partial(_pcnn_kernel, T),
        out_shape=jax.ShapeDtypeStruct((N_pad, C_pad), jnp.float32),
        grid_spec=pltpu.PrefetchScalarGridSpec(
            num_scalar_prefetch=0,
            grid=(N_pad // B,),
            in_specs=[
                pl.BlockSpec((B, T_pad, K_pad), lambda i: (i, 0, 0)),
                pl.BlockSpec((B, 8), lambda i: (i, 0)),
                pl.BlockSpec((K_pad, F_pad), lambda i: (0, 0)),
                pl.BlockSpec((1, F_pad), lambda i: (0, 0)),
                pl.BlockSpec((3, F_pad, C_pad), lambda i: (0, 0, 0)),
                pl.BlockSpec((1, C_pad), lambda i: (0, 0)),
            ],
            out_specs=pl.BlockSpec((B, C_pad), lambda i: (i, 0)),
        ),
        compiler_params=pltpu.CompilerParams(
            dimension_semantics=("parallel",),
            vmem_limit_bytes=int(vmem_limit_bytes),
        ),
        cost_estimate=cost,
    )(xp, ep, cw, cb, ow, ob)
    return out[:N, :C]


def reference_scores(x_col, e1, e2, conv_w_mat, conv_b_vec, W_out, b_out):
    """Pure-JAX f32 mirror of the torch forward (for verification)."""
    h = jnp.tanh(jnp.einsum("ntk,kf->ntf", x_col, conv_w_mat) + conv_b_vec)  # (N,T,F)
    N, T, F = h.shape
    t = jnp.arange(T)[None, :, None]
    neg = -jnp.inf
    p1 = jnp.max(jnp.where(t <= e1[:, None, None], h, neg), axis=1)
    p2 = jnp.max(jnp.where((t >= e1[:, None, None]) & (t <= e2[:, None, None]), h, neg), axis=1)
    p3 = jnp.max(jnp.where(t >= e2[:, None, None], h, neg), axis=1)
    pool = jnp.stack([p1, p2, p3], axis=1)                     # (N, 3, F)
    # torch: cat -> t() -> resize(1, 3F)  => feature index f*3 + p
    feat_torch = jnp.transpose(pool, (0, 2, 1)).reshape(N, 3 * F)
    return feat_torch @ W_out.T + b_out


if __name__ == "__main__":
    key = jax.random.PRNGKey(0)

    # small config consistent with the module's forward
    sentence_word = 8              # sequence length S
    word_embedding_dim = 16
    PF_embedding_dim = 8
    filter_size = 1                # torch pool3 kernel size requires conv-time == S
    num_filters = 8
    num_classes = 4
    vocab_size = 20
    num_positions = 2 * sentence_word

    D = word_embedding_dim + 2 * PF_embedding_dim
    K = filter_size * D
    T = sentence_word - filter_size + 1

    ks = jax.random.split(key, 10)
    word_embedding = jax.random.normal(ks[0], (vocab_size, word_embedding_dim), jnp.float32)
    PF1_embedding = jax.random.normal(ks[1], (num_positions, PF_embedding_dim), jnp.float32)
    PF2_embedding = jax.random.normal(ks[2], (num_positions, PF_embedding_dim), jnp.float32)
    conv_w = 0.1 * jax.random.normal(ks[3], (num_filters, 1, filter_size, D), jnp.float32)
    conv_b = 0.1 * jax.random.normal(ks[4], (num_filters,), jnp.float32)
    W_out = 0.1 * jax.random.normal(ks[5], (num_classes, 3 * num_filters), jnp.float32)
    b_out = 0.1 * jax.random.normal(ks[6], (num_classes,), jnp.float32)

    # synthetic "bags": 2 bags with 2 and 3 sentences, one relation label each
    bag_sizes = [2, 3]
    bag_rels = [1, 3]
    N = sum(bag_sizes)

    word_ids = jax.random.randint(ks[7], (N, sentence_word), 0, vocab_size)
    pf1_ids = jax.random.randint(ks[8], (N, sentence_word), 0, num_positions)
    pf2_ids = jax.random.randint(ks[9], (N, sentence_word), 0, num_positions)
    e1 = jnp.array([2, 1, 0, 3, 4], dtype=jnp.int32)   # entity position 1 per sentence
    e2 = jnp.array([5, 6, 4, 7, 6], dtype=jnp.int32)   # entity position 2 per sentence

    # --- glue: embedding lookups + concat (torch: Embedding + cat + unsqueeze) ---
    sent_emb = jnp.take(word_embedding, word_ids, axis=0)
    pf1_emb = jnp.take(PF1_embedding, pf1_ids, axis=0)
    pf2_emb = jnp.take(PF2_embedding, pf2_ids, axis=0)
    x = jnp.concatenate([sent_emb, pf1_emb, pf2_emb], axis=2)          # (N, S, D)

    # im2col for the full-width (filter_size, D) conv kernel
    x_col = jnp.stack(
        [x[:, t:t + filter_size, :].reshape(N, K) for t in range(T)], axis=1
    )                                                                   # (N, T, K)
    conv_w_mat = conv_w.reshape(num_filters, K).T                       # (K, F)

    scores = pcnn_scores(x_col, e1, e2, conv_w_mat, conv_b, W_out, b_out)
    scores = jax.block_until_ready(scores)

    # TODO(synk): nn.Dropout(p=0.5) is stochastic; treated as identity (eval mode),
    # so scores_out == scores.
    scores_out = scores

    # verify against a pure-JAX f32 reference of the torch math (kernel uses
    # bf16 matmul inputs -> loosened tolerance)
    scores_ref = reference_scores(x_col, e1, e2, conv_w_mat, conv_b, W_out, b_out)
    assert jnp.allclose(scores, scores_ref, rtol=2e-2, atol=2e-2), "mismatch vs reference"

    # per-bag selection (ragged, data-dependent -> host-side glue, like torch's loop)
    outputs = []
    start = 0
    for num, rel in zip(bag_sizes, bag_rels):
        end = start + num
        j = start + int(jnp.argmax(scores[start:end, rel]))
        outputs.append(scores_out[j])
        start = end
    output = jnp.stack(outputs)                    # (num_bags, num_classes)
    output = jax.block_until_ready(output)
    assert output.shape == (len(bag_sizes), num_classes)

    print("KERNEL_OK")
</pallas_src>

<mosaic_0001>
module attributes {stable_mosaic.version = 11 : i64} {
  func.func @_pcnn_kernel(%arg0: i32, %arg1: memref<8x16x128xbf16, #tpu.memory_space<vmem>>, %arg2: memref<8x8xi32, #tpu.memory_space<vmem>>, %arg3: memref<128x128xbf16, #tpu.memory_space<vmem>>, %arg4: memref<1x128xf32, #tpu.memory_space<vmem>>, %arg5: memref<3x128x128xbf16, #tpu.memory_space<vmem>>, %arg6: memref<1x128xf32, #tpu.memory_space<vmem>>, %arg7: memref<8x128xf32, #tpu.memory_space<vmem>>) attributes {dimension_semantics = [#tpu.dimension_semantics<parallel>], iteration_bounds = array<i64: 1>, scalar_prefetch = 0 : i64, scratch_operands = 0 : i64, tpu.core_type = #tpu.core_type<tc>, window_params = [{transform_indices = @transform_0, window_bounds = array<i64: 8, 16, 128>}, {transform_indices = @transform_1, window_bounds = array<i64: 8, 8>}, {pipeline_mode = #tpu.pipeline_mode<synchronous>, transform_indices = @transform_2, window_bounds = array<i64: 128, 128>}, {pipeline_mode = #tpu.pipeline_mode<synchronous>, transform_indices = @transform_3, window_bounds = array<i64: 1, 128>}, {pipeline_mode = #tpu.pipeline_mode<synchronous>, transform_indices = @transform_4, window_bounds = array<i64: 3, 128, 128>}, {pipeline_mode = #tpu.pipeline_mode<synchronous>, transform_indices = @transform_5, window_bounds = array<i64: 1, 128>}, {transform_indices = @transform_6, window_bounds = array<i64: 8, 128>}]} {
    %c0 = arith.constant 0 : index
    %c0_0 = arith.constant 0 : index
    %c0_1 = arith.constant 0 : index
    %0 = vector.load %arg1[%c0, %c0_0, %c0_1] : memref<8x16x128xbf16, #tpu.memory_space<vmem>>, vector<8x16x128xbf16>
    %1 = vector.shape_cast %0 : vector<8x16x128xbf16> to vector<128x128xbf16>
    %c0_2 = arith.constant 0 : index
    %c0_3 = arith.constant 0 : index
    %2 = vector.load %arg3[%c0_2, %c0_3] : memref<128x128xbf16, #tpu.memory_space<vmem>>, vector<128x128xbf16>
    %cst = arith.constant dense<0.000000e+00> : vector<128x128xf32>
    %3 = tpu.matmul %1, %2, %cst {dimension_numbers = #tpu.dot_dimension_numbers<[1], [0], [0], [1], [0, 0, 1, 1], [], []>} : vector<128x128xbf16>, vector<128x128xbf16>, vector<128x128xf32> -> vector<128x128xf32>
    %4 = vector.shape_cast %3 : vector<128x128xf32> to vector<8x16x128xf32>
    %c0_4 = arith.constant 0 : index
    %c0_5 = arith.constant 0 : index
    %5 = vector.load %arg2[%c0_4, %c0_5] : memref<8x8xi32, #tpu.memory_space<vmem>>, vector<8x8xi32>
    %6 = vector.extract_strided_slice %5 {offsets = [0, 0], sizes = [8, 1], strides = [1, 1]} : vector<8x8xi32> to vector<8x1xi32>
    %7 = vector.shape_cast %6 : vector<8x1xi32> to vector<8x1x1xi32>
    %8 = vector.extract_strided_slice %5 {offsets = [0, 1], sizes = [8, 1], strides = [1, 1]} : vector<8x8xi32> to vector<8x1xi32>
    %9 = vector.shape_cast %8 : vector<8x1xi32> to vector<8x1x1xi32>
    %cst_6 = arith.constant -3.000000e+38 : f32
    %10 = vector.broadcast %cst_6 : f32 to vector<8x128xf32>
    %cst_7 = arith.constant -3.000000e+38 : f32
    %11 = vector.broadcast %cst_7 : f32 to vector<8x128xf32>
    %cst_8 = arith.constant -3.000000e+38 : f32
    %12 = vector.broadcast %cst_8 : f32 to vector<8x128xf32>
    %13 = vector.extract_strided_slice %4 {offsets = [0, 0, 0], sizes = [8, 8, 128], strides = [1, 1, 1]} : vector<8x16x128xf32> to vector<8x8x128xf32>
    %14 = tpu.iota {dimensions = array<i32: 1>} : vector<1x8x1xi32>
    %c0_i32 = arith.constant 0 : i32
    %15 = vector.broadcast %c0_i32 : i32 to vector<1x8x1xi32>
    %16 = arith.addi %15, %14 : vector<1x8x1xi32>
    %c8_i32 = arith.constant 8 : i32
    %17 = vector.broadcast %c8_i32 : i32 to vector<1x8x1xi32>
    %18 = arith.cmpi slt, %16, %17 : vector<1x8x1xi32>
    %19 = vector.broadcast %16 : vector<1x8x1xi32> to vector<8x8x1xi32>
    %20 = vector.broadcast %7 : vector<8x1x1xi32> to vector<8x8x1xi32>
    %21 = arith.cmpi sle, %19, %20 : vector<8x8x1xi32>
    %22 = vector.broadcast %18 : vector<1x8x1xi1> to vector<8x8x1xi1>
    %23 = arith.andi %21, %22 : vector<8x8x1xi1>
    %24 = vector.broadcast %16 : vector<1x8x1xi32> to vector<8x8x1xi32>
    %25 = vector.broadcast %7 : vector<8x1x1xi32> to vector<8x8x1xi32>
    %26 = arith.cmpi sge, %24, %25 : vector<8x8x1xi32>
    %27 = vector.broadcast %16 : vector<1x8x1xi32> to vector<8x8x1xi32>
    %28 = vector.broadcast %9 : vector<8x1x1xi32> to vector<8x8x1xi32>
    %29 = arith.cmpi sle, %27, %28 : vector<8x8x1xi32>
    %30 = arith.andi %26, %29 : vector<8x8x1xi1>
    %31 = vector.broadcast %18 : vector<1x8x1xi1> to vector<8x8x1xi1>
    %32 = arith.andi %30, %31 : vector<8x8x1xi1>
    %33 = vector.broadcast %16 : vector<1x8x1xi32> to vector<8x8x1xi32>
    %34 = vector.broadcast %9 : vector<8x1x1xi32> to vector<8x8x1xi32>
    %35 = arith.cmpi sge, %33, %34 : vector<8x8x1xi32>
    %36 = vector.broadcast %18 : vector<1x8x1xi1> to vector<8x8x1xi1>
    %37 = arith.andi %35, %36 : vector<8x8x1xi1>
    %cst_9 = arith.constant -3.000000e+38 : f32
    %38 = vector.shape_cast %23 : vector<8x8x1xi1> to vector<8x8x1xi1>
    %39 = vector.broadcast %38 : vector<8x8x1xi1> to vector<8x8x128xi1>
    %40 = vector.broadcast %cst_9 : f32 to vector<8x8x128xf32>
    %41 = arith.select %39, %13, %40 : vector<8x8x128xi1>, vector<8x8x128xf32>
    %cst_10 = arith.constant dense<0xFF800000> : vector<8x128xf32>
    %42 = vector.multi_reduction <maximumf>, %41, %cst_10 [1] : vector<8x8x128xf32> to vector<8x128xf32>
    %43 = arith.maximumf %10, %42 : vector<8x128xf32>
    %cst_11 = arith.constant -3.000000e+38 : f32
    %44 = vector.shape_cast %32 : vector<8x8x1xi1> to vector<8x8x1xi1>
    %45 = vector.broadcast %44 : vector<8x8x1xi1> to vector<8x8x128xi1>
    %46 = vector.broadcast %cst_11 : f32 to vector<8x8x128xf32>
    %47 = arith.select %45, %13, %46 : vector<8x8x128xi1>, vector<8x8x128xf32>
    %cst_12 = arith.constant dense<0xFF800000> : vector<8x128xf32>
    %48 = vector.multi_reduction <maximumf>, %47, %cst_12 [1] : vector<8x8x128xf32> to vector<8x128xf32>
    %49 = arith.maximumf %11, %48 : vector<8x128xf32>
    %cst_13 = arith.constant -3.000000e+38 : f32
    %50 = vector.shape_cast %37 : vector<8x8x1xi1> to vector<8x8x1xi1>
    %51 = vector.broadcast %50 : vector<8x8x1xi1> to vector<8x8x128xi1>
    %52 = vector.broadcast %cst_13 : f32 to vector<8x8x128xf32>
    %53 = arith.select %51, %13, %52 : vector<8x8x128xi1>, vector<8x8x128xf32>
    %cst_14 = arith.constant dense<0xFF800000> : vector<8x128xf32>
    %54 = vector.multi_reduction <maximumf>, %53, %cst_14 [1] : vector<8x8x128xf32> to vector<8x128xf32>
    %55 = arith.maximumf %12, %54 : vector<8x128xf32>
    %56 = vector.extract_strided_slice %4 {offsets = [0, 8, 0], sizes = [8, 8, 128], strides = [1, 1, 1]} : vector<8x16x128xf32> to vector<8x8x128xf32>
    %57 = tpu.iota {dimensions = array<i32: 1>} : vector<1x8x1xi32>
    %c8_i32_15 = arith.constant 8 : i32
    %58 = vector.broadcast %c8_i32_15 : i32 to vector<1x8x1xi32>
    %59 = arith.addi %58, %57 : vector<1x8x1xi32>
    %c8_i32_16 = arith.constant 8 : i32
    %60 = vector.broadcast %c8_i32_16 : i32 to vector<1x8x1xi32>
    %61 = arith.cmpi slt, %59, %60 : vector<1x8x1xi32>
    %62 = vector.broadcast %59 : vector<1x8x1xi32> to vector<8x8x1xi32>
    %63 = vector.broadcast %7 : vector<8x1x1xi32> to vector<8x8x1xi32>
    %64 = arith.cmpi sle, %62, %63 : vector<8x8x1xi32>
    %65 = vector.broadcast %61 : vector<1x8x1xi1> to vector<8x8x1xi1>
    %66 = arith.andi %64, %65 : vector<8x8x1xi1>
    %67 = vector.broadcast %59 : vector<1x8x1xi32> to vector<8x8x1xi32>
    %68 = vector.broadcast %7 : vector<8x1x1xi32> to vector<8x8x1xi32>
    %69 = arith.cmpi sge, %67, %68 : vector<8x8x1xi32>
    %70 = vector.broadcast %59 : vector<1x8x1xi32> to vector<8x8x1xi32>
    %71 = vector.broadcast %9 : vector<8x1x1xi32> to vector<8x8x1xi32>
    %72 = arith.cmpi sle, %70, %71 : vector<8x8x1xi32>
    %73 = arith.andi %69, %72 : vector<8x8x1xi1>
    %74 = vector.broadcast %61 : vector<1x8x1xi1> to vector<8x8x1xi1>
    %75 = arith.andi %73, %74 : vector<8x8x1xi1>
    %76 = vector.broadcast %59 : vector<1x8x1xi32> to vector<8x8x1xi32>
    %77 = vector.broadcast %9 : vector<8x1x1xi32> to vector<8x8x1xi32>
    %78 = arith.cmpi sge, %76, %77 : vector<8x8x1xi32>
    %79 = vector.broadcast %61 : vector<1x8x1xi1> to vector<8x8x1xi1>
    %80 = arith.andi %78, %79 : vector<8x8x1xi1>
    %cst_17 = arith.constant -3.000000e+38 : f32
    %81 = vector.shape_cast %66 : vector<8x8x1xi1> to vector<8x8x1xi1>
    %82 = vector.broadcast %81 : vector<8x8x1xi1> to vector<8x8x128xi1>
    %83 = vector.broadcast %cst_17 : f32 to vector<8x8x128xf32>
    %84 = arith.select %82, %56, %83 : vector<8x8x128xi1>, vector<8x8x128xf32>
    %cst_18 = arith.constant dense<0xFF800000> : vector<8x128xf32>
    %85 = vector.multi_reduction <maximumf>, %84, %cst_18 [1] : vector<8x8x128xf32> to vector<8x128xf32>
    %86 = arith.maximumf %43, %85 : vector<8x128xf32>
    %cst_19 = arith.constant -3.000000e+38 : f32
    %87 = vector.shape_cast %75 : vector<8x8x1xi1> to vector<8x8x1xi1>
    %88 = vector.broadcast %87 : vector<8x8x1xi1> to vector<8x8x128xi1>
    %89 = vector.broadcast %cst_19 : f32 to vector<8x8x128xf32>
    %90 = arith.select %88, %56, %89 : vector<8x8x128xi1>, vector<8x8x128xf32>
    %cst_20 = arith.constant dense<0xFF800000> : vector<8x128xf32>
    %91 = vector.multi_reduction <maximumf>, %90, %cst_20 [1] : vector<8x8x128xf32> to vector<8x128xf32>
    %92 = arith.maximumf %49, %91 : vector<8x128xf32>
    %cst_21 = arith.constant -3.000000e+38 : f32
    %93 = vector.shape_cast %80 : vector<8x8x1xi1> to vector<8x8x1xi1>
    %94 = vector.broadcast %93 : vector<8x8x1xi1> to vector<8x8x128xi1>
    %95 = vector.broadcast %cst_21 : f32 to vector<8x8x128xf32>
    %96 = arith.select %94, %56, %95 : vector<8x8x128xi1>, vector<8x8x128xf32>
    %cst_22 = arith.constant dense<0xFF800000> : vector<8x128xf32>
    %97 = vector.multi_reduction <maximumf>, %96, %cst_22 [1] : vector<8x8x128xf32> to vector<8x128xf32>
    %98 = arith.maximumf %55, %97 : vector<8x128xf32>
    %c0_23 = arith.constant 0 : index
    %c0_24 = arith.constant 0 : index
    %99 = vector.load %arg4[%c0_23, %c0_24] : memref<1x128xf32, #tpu.memory_space<vmem>>, vector<1x128xf32>
    %100 = vector.broadcast %99 : vector<1x128xf32> to vector<8x128xf32>
    %101 = arith.addf %86, %100 : vector<8x128xf32>
    %102 = math.tanh %101 : vector<8x128xf32>
    %103 = arith.truncf %102 : vector<8x128xf32> to vector<8x128xbf16>
    %104 = vector.broadcast %99 : vector<1x128xf32> to vector<8x128xf32>
    %105 = arith.addf %92, %104 : vector<8x128xf32>
    %106 = math.tanh %105 : vector<8x128xf32>
    %107 = arith.truncf %106 : vector<8x128xf32> to vector<8x128xbf16>
    %108 = vector.broadcast %99 : vector<1x128xf32> to vector<8x128xf32>
    %109 = arith.addf %98, %108 : vector<8x128xf32>
    %110 = math.tanh %109 : vector<8x128xf32>
    %111 = arith.truncf %110 : vector<8x128xf32> to vector<8x128xbf16>
    %c0_25 = arith.constant 0 : index
    %c0_26 = arith.constant 0 : index
    %c0_27 = arith.constant 0 : index
    %112 = vector.load %arg5[%c0_25, %c0_26, %c0_27] : memref<3x128x128xbf16, #tpu.memory_space<vmem>>, vector<1x128x128xbf16>
    %113 = vector.shape_cast %112 : vector<1x128x128xbf16> to vector<128x128xbf16>
    %cst_28 = arith.constant dense<0.000000e+00> : vector<8x128xf32>
    %114 = tpu.matmul %103, %113, %cst_28 {dimension_numbers = #tpu.dot_dimension_numbers<[1], [0], [0], [1], [0, 0, 1, 1], [], []>} : vector<8x128xbf16>, vector<128x128xbf16>, vector<8x128xf32> -> vector<8x128xf32>
    %c1 = arith.constant 1 : index
    %c0_29 = arith.constant 0 : index
    %c0_30 = arith.constant 0 : index
    %115 = vector.load %arg5[%c1, %c0_29, %c0_30] : memref<3x128x128xbf16, #tpu.memory_space<vmem>>, vector<1x128x128xbf16>
    %116 = vector.shape_cast %115 : vector<1x128x128xbf16> to vector<128x128xbf16>
    %cst_31 = arith.constant dense<0.000000e+00> : vector<8x128xf32>
    %117 = tpu.matmul %107, %116, %cst_31 {dimension_numbers = #tpu.dot_dimension_numbers<[1], [0], [0], [1], [0, 0, 1, 1], [], []>} : vector<8x128xbf16>, vector<128x128xbf16>, vector<8x128xf32> -> vector<8x128xf32>
    %118 = arith.addf %114, %117 : vector<8x128xf32>
    %c2 = arith.constant 2 : index
    %c0_32 = arith.constant 0 : index
    %c0_33 = arith.constant 0 : index
    %119 = vector.load %arg5[%c2, %c0_32, %c0_33] : memref<3x128x128xbf16, #tpu.memory_space<vmem>>, vector<1x128x128xbf16>
    %120 = vector.shape_cast %119 : vector<1x128x128xbf16> to vector<128x128xbf16>
    %cst_34 = arith.constant dense<0.000000e+00> : vector<8x128xf32>
    %121 = tpu.matmul %111, %120, %cst_34 {dimension_numbers = #tpu.dot_dimension_numbers<[1], [0], [0], [1], [0, 0, 1, 1], [], []>} : vector<8x128xbf16>, vector<128x128xbf16>, vector<8x128xf32> -> vector<8x128xf32>
    %122 = arith.addf %118, %121 : vector<8x128xf32>
    %c0_35 = arith.constant 0 : index
    %c0_36 = arith.constant 0 : index
    %123 = vector.load %arg6[%c0_35, %c0_36] : memref<1x128xf32, #tpu.memory_space<vmem>>, vector<1x128xf32>
    %124 = vector.broadcast %123 : vector<1x128xf32> to vector<8x128xf32>
    %125 = arith.addf %122, %124 : vector<8x128xf32>
    %c0_37 = arith.constant 0 : index
    %c0_38 = arith.constant 0 : index
    %126 = vector.load %arg7[%c0_37, %c0_38] : memref<8x128xf32, #tpu.memory_space<vmem>>, vector<8x128xf32>
    tpu.vector_store %arg7[%c0_37, %c0_38], %125 {strides = array<i32>} : memref<8x128xf32, #tpu.memory_space<vmem>>, vector<8x128xf32>,
    return
  }
  func.func @transform_0(%arg0: i32) -> (i32, i32, i32) {
    %c0_i32 = arith.constant 0 : i32
    %c0_i32_0 = arith.constant 0 : i32
    %c0_i32_1 = arith.constant 0 : i32
    return %arg0, %c0_i32, %c0_i32_0 : i32, i32, i32
  }
  func.func @transform_1(%arg0: i32) -> (i32, i32) {
    %c0_i32 = arith.constant 0 : i32
    %c0_i32_0 = arith.constant 0 : i32
    return %arg0, %c0_i32 : i32, i32
  }
  func.func @transform_2(%arg0: i32) -> (i32, i32) {
    %c0_i32 = arith.constant 0 : i32
    %c0_i32_0 = arith.constant 0 : i32
    %c0_i32_1 = arith.constant 0 : i32
    return %c0_i32, %c0_i32_0 : i32, i32
  }
  func.func @transform_3(%arg0: i32) -> (i32, i32) {
    %c0_i32 = arith.constant 0 : i32
    %c0_i32_0 = arith.constant 0 : i32
    %c0_i32_1 = arith.constant 0 : i32
    return %c0_i32, %c0_i32_0 : i32, i32
  }
  func.func @transform_4(%arg0: i32) -> (i32, i32, i32) {
    %c0_i32 = arith.constant 0 : i32
    %c0_i32_0 = arith.constant 0 : i32
    %c0_i32_1 = arith.constant 0 : i32
    %c0_i32_2 = arith.constant 0 : i32
    return %c0_i32, %c0_i32_0, %c0_i32_1 : i32, i32, i32
  }
  func.func @transform_5(%arg0: i32) -> (i32, i32) {
    %c0_i32 = arith.constant 0 : i32
    %c0_i32_0 = arith.constant 0 : i32
    %c0_i32_1 = arith.constant 0 : i32
    return %c0_i32, %c0_i32_0 : i32, i32
  }
  func.func @transform_6(%arg0: i32) -> (i32, i32) {
    %c0_i32 = arith.constant 0 : i32
    %c0_i32_0 = arith.constant 0 : i32
    return %arg0, %c0_i32 : i32, i32
  }
}

</mosaic_0001>

<llo_original>
// kernel: tpu_custom_call.1
$region0: #{tpu_custom_call.1}
  #allocation0 [shape = 'u32[]', space=smem, size = 0x4, offset = 0x4, fixed_abs, tag = 'smem constant byte address 0x4 - core index']
  #allocation1 [shape = 'u32[72,128]{1,0:T(1,128)}', space=vmem, size = 0x9000, scoped, tag = 'internal scratch']
  %s0 = inlined_call_operand.hbm [shape: bf16[8,16,128], index: 0, kind: input, shape index: {}]
  %s1 = inlined_call_operand.hbm [shape: s32[8,8], index: 1, kind: input, shape index: {}]
  %s2 = inlined_call_operand.hbm [shape: bf16[128,128], index: 2, kind: input, shape index: {}]
  %s3 = inlined_call_operand.vmem [shape: f32[1,128], index: 3, kind: input, shape index: {}]
  %s4 = inlined_call_operand.hbm [shape: bf16[3,128,128], index: 4, kind: input, shape index: {}]
  %s5 = inlined_call_operand.vmem [shape: f32[1,128], index: 5, kind: input, shape index: {}]
  %s6 = inlined_call_operand.hbm [shape: f32[8,128], index: 6, kind: output, shape index: {}]
  %s7 = sld [smem:[#allocation0]]
  $region50: #{tpu_custom_call.1} parent=0
    _
  %s9 = ssub.s32 1, %s7
  %s10 = scalar_select 0, %s9, %s7
  $region1: #{tpu_custom_call.1} parent=0
    #allocation2 [shape = 'u8[32768]{0}', space=vmem, size = 0x8000, scoped, tag = 'input window, operand 0, single buffered']
    #allocation3 [shape = 's32[1]{0}', space=sflag, size = 0x4, scoped, tag = 'scoped memory for tpu_custom_call.1']
    #allocation4 [shape = 's32[1]{0}', space=sflag, size = 0x4, scoped, tag = 'scoped memory for tpu_custom_call.1']
    #allocation5 [shape = 'u8[4096]{0}', space=vmem, size = 0x1000, scoped, tag = 'input window, operand 1, single buffered']
    #allocation6 [shape = 's32[1]{0}', space=sflag, size = 0x4, scoped, tag = 'scoped memory for tpu_custom_call.1']
    #allocation7 [shape = 'u8[32768]{0}', space=vmem, size = 0x8000, scoped, tag = 'input window, operand 2, single buffered']
    #allocation8 [shape = 'u8[98304]{0}', space=vmem, size = 0x18000, scoped, tag = 'input window, operand 4, single buffered']
    #allocation9 [shape = 's32[1]{0}', space=sflag, size = 0x4, scoped, tag = 'scoped memory for tpu_custom_call.1']
    #allocation10 [shape = 'u8[4096]{0}', space=vmem, size = 0x1000, scoped, tag = 'output window, operand 0, single buffered']
    %11 = vsyncpa [#allocation3], 0
    %12 = vsyncpa [#allocation6], 0
    %13 = vsyncpa [#allocation9], 0
    %14 = vsyncpa [#allocation4], 0
    // Predicated region
    $region2: #{tpu_custom_call.1} parent=1 // pred_check
      _
    $region3: #{tpu_custom_call.1} parent=1 // pred_check_branch
      %16 = sbr.rel (0) target = $region5
    $region4: #{tpu_custom_call.1} parent=1 // pred_region
      %18 = vsyncadd [#allocation3], 0
      %s19 = sshll.u32 %s0, 4
      %s20 = int_to_ptr.hbm [resolvable:$true] %s19
      %s21 = sshll.u32 [#allocation2], 4
      %s22 = int_to_ptr.vmem [resolvable:$true] %s21
      %27 = dma.hbm_to_vmem [thread:$0]  %s20, 1024, %s22, [#allocation3], 64, 64, 4
    $region5: #{tpu_custom_call.1} parent=1 // pred_fallthru
      _
    // Predicated region
    $region6: #{tpu_custom_call.1} parent=1 // pred_check
      _
    $region7: #{tpu_custom_call.1} parent=1 // pred_check_branch
      %29 = sbr.rel (0) target = $region9
    $region8: #{tpu_custom_call.1} parent=1 // pred_region
      %31 = vsyncadd [#allocation6], 0
      %s33 = sshll.u32 %s1, 4
      %s34 = int_to_ptr.hbm [resolvable:$true] %s33
      %s35 = sshll.u32 [#allocation5], 4
      %s36 = int_to_ptr.vmem [resolvable:$true] %s35
      %38 = dma.hbm_to_vmem [thread:$0]  %s34, 128, %s36, [#allocation6]
    $region9: #{tpu_custom_call.1} parent=1 // pred_fallthru
      _
    // Predicated region
    $region10: #{tpu_custom_call.1} parent=1 // pred_check
      _
    $region11: #{tpu_custom_call.1} parent=1 // pred_check_branch
      %40 = sbr.rel (0) target = $region13
    $region12: #{tpu_custom_call.1} parent=1 // pred_region
      %42 = vsyncadd [#allocation6], 0
      %s43 = sshll.u32 %s2, 4
      %s44 = int_to_ptr.hbm [resolvable:$true] %s43
      %s45 = sshll.u32 [#allocation7], 4
      %s46 = int_to_ptr.vmem [resolvable:$true] %s45
      %51 = dma.hbm_to_vmem [thread:$0]  %s44, 1024, %s46, [#allocation6], 64, 64, 4
    $region13: #{tpu_custom_call.1} parent=1 // pred_fallthru
      _
    // Predicated region
    $region14: #{tpu_custom_call.1} parent=1 // pred_check
      _
    $region15: #{tpu_custom_call.1} parent=1 // pred_check_branch
      %53 = sbr.rel (0) target = $region17
    $region16: #{tpu_custom_call.1} parent=1 // pred_region
      _
    $region17: #{tpu_custom_call.1} parent=1 // pred_fallthru
      _
    // Predicated region
    $region18: #{tpu_custom_call.1} parent=1 // pred_check
      _
    $region19: #{tpu_custom_call.1} parent=1 // pred_check_branch
      %55 = sbr.rel (0) target = $region21
    $region20: #{tpu_custom_call.1} parent=1 // pred_region
      %57 = vsyncadd [#allocation9], 0
      %s58 = sshll.u32 %s4, 4
      %s59 = int_to_ptr.hbm [resolvable:$true] %s58
      %s60 = sshll.u32 [#allocation8], 4
      %s61 = int_to_ptr.vmem [resolvable:$true] %s60
      %66 = dma.hbm_to_vmem [thread:$0]  %s59, 3072, %s61, [#allocation9], 64, 64, 4
    $region21: #{tpu_custom_call.1} parent=1 // pred_fallthru
      _
    // Predicated region
    $region22: #{tpu_custom_call.1} parent=1 // pred_check
      _
    $region23: #{tpu_custom_call.1} parent=1 // pred_check_branch
      %68 = sbr.rel (0) target = $region25
    $region24: #{tpu_custom_call.1} parent=1 // pred_region
      _
    $region25: #{tpu_custom_call.1} parent=1 // pred_fallthru
      _
    // Predicated region
    $region26: #{tpu_custom_call.1} parent=1 // pred_check
      _
    $region27: #{tpu_custom_call.1} parent=1 // pred_check_branch
      %70 = sbr.rel (0) target = $region29
    $region28: #{tpu_custom_call.1} parent=1 // pred_region
      %72 = dma.done [#allocation3], 1024
    $region29: #{tpu_custom_call.1} parent=1 // pred_fallthru
      _
    // Predicated region
    $region30: #{tpu_custom_call.1} parent=1 // pred_check
      _
    $region31: #{tpu_custom_call.1} parent=1 // pred_check_branch
      %74 = sbr.rel (0) target = $region33
    $region32: #{tpu_custom_call.1} parent=1 // pred_region
      %76 = dma.done [#allocation6], 128
    $region33: #{tpu_custom_call.1} parent=1 // pred_fallthru
      _
    // Predicated region
    $region34: #{tpu_custom_call.1} parent=1 // pred_check
      _
    $region35: #{tpu_custom_call.1} parent=1 // pred_check_branch
      %78 = sbr.rel (0) target = $region37
    $region36: #{tpu_custom_call.1} parent=1 // pred_region
      %80 = dma.done [#allocation6], 1024
    $region37: #{tpu_custom_call.1} parent=1 // pred_fallthru
      _
    // Predicated region
    $region38: #{tpu_custom_call.1} parent=1 // pred_check
      _
    $region39: #{tpu_custom_call.1} parent=1 // pred_check_branch
      %82 = sbr.rel (0) target = $region41
    $region40: #{tpu_custom_call.1} parent=1 // pred_region
      %84 = dma.done [#allocation9], 3072
    $region41: #{tpu_custom_call.1} parent=1 // pred_fallthru
      _
    %v85 = vld [vmem:[#allocation2] sm:$0xf]
    %v86 = vld [vmem:[#allocation2 + $0x4] sm:$0xf]
    %v87 = vld [vmem:[#allocation2 + $0x8] sm:$0xf]
    %v88 = vld [vmem:[#allocation2 + $0xc] sm:$0xf]
    %v89 = vld [vmem:[#allocation2 + $0x10] sm:$0xf]
    %v90 = vld [vmem:[#allocation2 + $0x14] sm:$0xf]
    %v91 = vld [vmem:[#allocation2 + $0x18] sm:$0xf]
    %v92 = vld [vmem:[#allocation2 + $0x1c] sm:$0xf]
    %v93 = vld [vmem:[#allocation2 + $0x20] sm:$0xf]
    %v94 = vld [vmem:[#allocation2 + $0x24] sm:$0xf]
    %v95 = vld [vmem:[#allocation2 + $0x28] sm:$0xf]
    %v96 = vld [vmem:[#allocation2 + $0x2c] sm:$0xf]
    %v97 = vld [vmem:[#allocation2 + $0x30] sm:$0xf]
    %v98 = vld [vmem:[#allocation2 + $0x34] sm:$0xf]
    %v99 = vld [vmem:[#allocation2 + $0x38] sm:$0xf]
    %v100 = vld [vmem:[#allocation2 + $0x3c] sm:$0xf]
    %v101 = vld [vmem:[#allocation7] sm:$0xf]
    %v102 = vld [vmem:[#allocation7 + $0x4] sm:$0xf]
    %v103 = vld [vmem:[#allocation7 + $0x8] sm:$0xf]
    %v104 = vld [vmem:[#allocation7 + $0xc] sm:$0xf]
    %v105 = vld [vmem:[#allocation7 + $0x10] sm:$0xf]
    %v106 = vld [vmem:[#allocation7 + $0x14] sm:$0xf]
    %v107 = vld [vmem:[#allocation7 + $0x18] sm:$0xf]
    %v108 = vld [vmem:[#allocation7 + $0x1c] sm:$0xf]
    %v109 = vld [vmem:[#allocation7 + $0x20] sm:$0xf]
    %v110 = vld [vmem:[#allocation7 + $0x24] sm:$0xf]
    %v111 = vld [vmem:[#allocation7 + $0x28] sm:$0xf]
    %v112 = vld [vmem:[#allocation7 + $0x2c] sm:$0xf]
    %v113 = vld [vmem:[#allocation7 + $0x30] sm:$0xf]
    %v114 = vld [vmem:[#allocation7 + $0x34] sm:$0xf]
    %v115 = vld [vmem:[#allocation7 + $0x38] sm:$0xf]
    %v116 = vld [vmem:[#allocation7 + $0x3c] sm:$0xf]
    %v133 = vunpack.c.l.b16 %v85
    %v134 = vunpack.c.l.b16 %v86
    %v135 = vunpack.c.l.b16 %v87
    %v136 = vunpack.c.l.b16 %v88
    %v137 = vunpack.c.l.b16 %v89
    %v138 = vunpack.c.l.b16 %v90
    %v139 = vunpack.c.l.b16 %v91
    %v140 = vunpack.c.l.b16 %v92
    %v141 = vunpack.c.l.b16 %v93
    %v142 = vunpack.c.l.b16 %v94
    %v143 = vunpack.c.l.b16 %v95
    %v144 = vunpack.c.l.b16 %v96
    %v145 = vunpack.c.l.b16 %v97
    %v146 = vunpack.c.l.b16 %v98
    %v147 = vunpack.c.l.b16 %v99
    %v148 = vunpack.c.l.b16 %v100
    %v149 = vpack.c.b16 %v134, %v133
    %v150 = vpack.c.b16 %v136, %v135
    %v151 = vpack.c.b16 %v138, %v137
    %v152 = vpack.c.b16 %v140, %v139
    %v153 = vpack.c.b16 %v142, %v141
    %v154 = vpack.c.b16 %v144, %v143
    %v155 = vpack.c.b16 %v146, %v145
    %v156 = vpack.c.b16 %v148, %v147
    %v181 = vunpack.c.l.b16 %v101
    %v182 = vunpack.c.l.b16 %v102
    %v183 = vunpack.c.l.b16 %v103
    %v184 = vunpack.c.l.b16 %v104
    %v185 = vunpack.c.l.b16 %v105
    %v186 = vunpack.c.l.b16 %v106
    %v187 = vunpack.c.l.b16 %v107
    %v188 = vunpack.c.l.b16 %v108
    %v189 = vunpack.c.l.b16 %v109
    %v190 = vunpack.c.l.b16 %v110
    %v191 = vunpack.c.l.b16 %v111
    %v192 = vunpack.c.l.b16 %v112
    %v193 = vunpack.c.l.b16 %v113
    %v194 = vunpack.c.l.b16 %v114
    %v195 = vunpack.c.l.b16 %v115
    %v196 = vunpack.c.l.b16 %v116
    %v197 = vpack.c.b16 %v182, %v181
    %v198 = vpack.c.b16 %v184, %v183
    %v199 = vpack.c.b16 %v186, %v185
    %v200 = vpack.c.b16 %v188, %v187
    %v201 = vpack.c.b16 %v190, %v189
    %v202 = vpack.c.b16 %v192, %v191
    %v203 = vpack.c.b16 %v194, %v193
    %v204 = vpack.c.b16 %v196, %v195
    %213 = vmatpush.bf16.msra.mxu0 %v204
    %214 = vmatpush.bf16.msra.mxu0 %v203
    %215 = vmatpush.bf16.msra.mxu0 %v202
    %216 = vmatpush.bf16.msra.mxu0 %v201
    %217 = vmatpush.bf16.msra.mxu0 %v200
    %218 = vmatpush.bf16.msra.mxu0 %v199
    %219 = vmatpush.bf16.msra.mxu0 %v198
    %220 = vmatpush.bf16.msra.mxu0 %v197
    %221 = vmatmul.bf16.gmra.mxu0 %v149
    %v222 = vpop.f32.mrf.mxu0
    %v223 = vadd.f32 0.0, %v222
    %v224 = vpop.f32.mrf.mxu0
    %v225 = vadd.f32 0.0, %v224
    %226 = vmatmul.bf16.gmra.mxu0 %v150
    %v227 = vpop.f32.mrf.mxu0
    %v228 = vadd.f32 0.0, %v227
    %v229 = vpop.f32.mrf.mxu0
    %v230 = vadd.f32 0.0, %v229
    %231 = vmatmul.bf16.gmra.mxu0 %v151
    %v232 = vpop.f32.mrf.mxu0
    %v233 = vadd.f32 0.0, %v232
    %v234 = vpop.f32.mrf.mxu0
    %v235 = vadd.f32 0.0, %v234
    %236 = vmatmul.bf16.gmra.mxu0 %v152
    %v237 = vpop.f32.mrf.mxu0
    %v238 = vadd.f32 0.0, %v237
    %v239 = vpop.f32.mrf.mxu0
    %v240 = vadd.f32 0.0, %v239
    %241 = vmatmul.bf16.gmra.mxu0 %v153
    %v242 = vpop.f32.mrf.mxu0
    %v243 = vadd.f32 0.0, %v242
    %v244 = vpop.f32.mrf.mxu0
    %v245 = vadd.f32 0.0, %v244
    %246 = vmatmul.bf16.gmra.mxu0 %v154
    %v247 = vpop.f32.mrf.mxu0
    %v248 = vadd.f32 0.0, %v247
    %v249 = vpop.f32.mrf.mxu0
    %v250 = vadd.f32 0.0, %v249
    %251 = vmatmul.bf16.gmra.mxu0 %v155
    %v252 = vpop.f32.mrf.mxu0
    %v253 = vadd.f32 0.0, %v252
    %v254 = vpop.f32.mrf.mxu0
    %v255 = vadd.f32 0.0, %v254
    %256 = vmatmul.bf16.gmra.mxu0 %v156
    %v257 = vpop.f32.mrf.mxu0
    %v258 = vadd.f32 0.0, %v257
    %v259 = vpop.f32.mrf.mxu0
    %v260 = vadd.f32 0.0, %v259
    %261 = vdwg.mxu0
    %v262 = vld [vmem:[#allocation5] sm:$0xff]
    %v263 = vrot.slane %v262, 1
    %v264 = vrot.slane %v262, 2
    %v265 = vrot.slane %v262, 3
    %v266 = vrot.slane %v262, 4
    %v267 = vrot.slane %v262, 5
    %v268 = vrot.slane %v262, 6
    %v269 = vrot.slane %v262, 7
    %v270 = vlaneseq
    %v271 = vshrl.u32 %v270, 7
    %vm272 = vcmp.lt.s32.totalorder %v271, 8
    %v273 = vperm.slane %v262, 0
    %v274 = vperm.slane %v263, 0
    %v275 = vperm.slane %v264, 0
    %v276 = vperm.slane %v265, 0
    %v277 = vperm.slane %v266, 0
    %v278 = vperm.slane %v267, 0
    %v279 = vperm.slane %v268, 0
    %v280 = vperm.slane %v269, 0
    %vm281 = vcmp.le.s32.totalorder %v271, %v273
    %vm282 = vcmp.le.s32.totalorder %v271, %v274
    %vm283 = vcmp.le.s32.totalorder %v271, %v275
    %vm284 = vcmp.le.s32.totalorder %v271, %v276
    %vm285 = vcmp.le.s32.totalorder %v271, %v277
    %vm286 = vcmp.le.s32.totalorder %v271, %v278
    %vm287 = vcmp.le.s32.totalorder %v271, %v279
    %vm288 = vcmp.le.s32.totalorder %v271, %v280
    %v289 = vsel %vm272, 1, 0
    %vm290 = vcmp.eq.s32.totalorder %v289, 1
    %vm291 = vmand %vm281, %vm290
    %vm292 = vmand %vm282, %vm290
    %vm293 = vmand %vm283, %vm290
    %vm294 = vmand %vm284, %vm290
    %vm295 = vmand %vm285, %vm290
    %vm296 = vmand %vm286, %vm290
    %vm297 = vmand %vm287, %vm290
    %vm298 = vmand %vm288, %vm290
    %vm299 = vcmp.ge.s32.totalorder %v271, %v273
    %vm300 = vcmp.ge.s32.totalorder %v271, %v274
    %vm301 = vcmp.ge.s32.totalorder %v271, %v275
    %vm302 = vcmp.ge.s32.totalorder %v271, %v276
    %vm303 = vcmp.ge.s32.totalorder %v271, %v277
    %vm304 = vcmp.ge.s32.totalorder %v271, %v278
    %vm305 = vcmp.ge.s32.totalorder %v271, %v279
    %vm306 = vcmp.ge.s32.totalorder %v271, %v280
    %v307 = vsel %vm281, 1, 0
    %v308 = vsel %vm282, 1, 0
    %v309 = vsel %vm283, 1, 0
    %v310 = vsel %vm284, 1, 0
    %v311 = vsel %vm285, 1, 0
    %v312 = vsel %vm286, 1, 0
    %v313 = vsel %vm287, 1, 0
    %v314 = vsel %vm288, 1, 0
    %315 = vrot.lane.b32.xlu0 %v307, 127
    %v316 = vpop.permute.xlu0 %315
    %317 = vrot.lane.b32.xlu0 %v308, 127
    %v318 = vpop.permute.xlu0 %317
    %319 = vrot.lane.b32.xlu0 %v309, 127
    %v320 = vpop.permute.xlu0 %319
    %321 = vrot.lane.b32.xlu0 %v310, 127
    %v322 = vpop.permute.xlu0 %321
    %323 = vrot.lane.b32.xlu0 %v311, 127
    %v324 = vpop.permute.xlu0 %323
    %325 = vrot.lane.b32.xlu0 %v312, 127
    %v326 = vpop.permute.xlu0 %325
    %327 = vrot.lane.b32.xlu0 %v313, 127
    %v328 = vpop.permute.xlu0 %327
    %329 = vrot.lane.b32.xlu0 %v314, 127
    %v330 = vpop.permute.xlu0 %329
    %vm331 = vcmp.ne.s32.totalorder %v316, 0
    %vm332 = vcmp.ne.s32.totalorder %v318, 0
    %vm333 = vcmp.ne.s32.totalorder %v320, 0
    %vm334 = vcmp.ne.s32.totalorder %v322, 0
    %vm335 = vcmp.ne.s32.totalorder %v324, 0
    %vm336 = vcmp.ne.s32.totalorder %v326, 0
    %vm337 = vcmp.ne.s32.totalorder %v328, 0
    %vm338 = vcmp.ne.s32.totalorder %v330, 0
    %vm339 = vmand %vm299, %vm331
    %vm340 = vmand %vm300, %vm332
    %vm341 = vmand %vm301, %vm333
    %vm342 = vmand %vm302, %vm334
    %vm343 = vmand %vm303, %vm335
    %vm344 = vmand %vm304, %vm336
    %vm345 = vmand %vm305, %vm337
    %vm346 = vmand %vm306, %vm338
    %vm347 = vmand %vm339, %vm290
    %vm348 = vmand %vm340, %vm290
    %vm349 = vmand %vm341, %vm290
    %vm350 = vmand %vm342, %vm290
    %vm351 = vmand %vm343, %vm290
    %vm352 = vmand %vm344, %vm290
    %vm353 = vmand %vm345, %vm290
    %vm354 = vmand %vm346, %vm290
    %vm355 = vmand %vm299, %vm290
    %vm356 = vmand %vm300, %vm290
    %vm357 = vmand %vm301, %vm290
    %vm358 = vmand %vm302, %vm290
    %vm359 = vmand %vm303, %vm290
    %vm360 = vmand %vm304, %vm290
    %vm361 = vmand %vm305, %vm290
    %vm362 = vmand %vm306, %vm290
    %v363 = vsel %vm291, 1, 0
    %v364 = vsel %vm292, 1, 0
    %v365 = vsel %vm293, 1, 0
    %v366 = vsel %vm294, 1, 0
    %v367 = vsel %vm295, 1, 0
    %v368 = vsel %vm296, 1, 0
    %v369 = vsel %vm297, 1, 0
    %v370 = vsel %vm298, 1, 0
    %371 = vset.pattern.permute.xlu0 0
    %372 = vperm.xlu0 %371, %v363
    %v373 = vpop.permute.xlu0 %372
    %374 = vset.pattern.permute.xlu0 0
    %375 = vperm.xlu0 %374, %v364
    %v376 = vpop.permute.xlu0 %375
    %377 = vset.pattern.permute.xlu0 0
    %378 = vperm.xlu0 %377, %v365
    %v379 = vpop.permute.xlu0 %378
    %380 = vset.pattern.permute.xlu0 0
    %381 = vperm.xlu0 %380, %v366
    %v382 = vpop.permute.xlu0 %381
    %383 = vset.pattern.permute.xlu0 0
    %384 = vperm.xlu0 %383, %v367
    %v385 = vpop.permute.xlu0 %384
    %386 = vset.pattern.permute.xlu0 0
    %387 = vperm.xlu0 %386, %v368
    %v388 = vpop.permute.xlu0 %387
    %389 = vset.pattern.permute.xlu0 0
    %390 = vperm.xlu0 %389, %v369
    %v391 = vpop.permute.xlu0 %390
    %392 = vset.pattern.permute.xlu0 0
    %393 = vperm.xlu0 %392, %v370
    %v394 = vpop.permute.xlu0 %393
    %vm395 = vcmp.eq.s32.totalorder %v373, 1
    %vm396 = vcmp.eq.s32.totalorder %v376, 1
    %vm397 = vcmp.eq.s32.totalorder %v379, 1
    %vm398 = vcmp.eq.s32.totalorder %v382, 1
    %vm399 = vcmp.eq.s32.totalorder %v385, 1
    %vm400 = vcmp.eq.s32.totalorder %v388, 1
    %vm401 = vcmp.eq.s32.totalorder %v391, 1
    %vm402 = vcmp.eq.s32.totalorder %v394, 1
    %v403 = vsel %vm395, %v223, -3e+38
    %v404 = vsel %vm396, %v228, -3e+38
    %v405 = vsel %vm397, %v233, -3e+38
    %v406 = vsel %vm398, %v238, -3e+38
    %v407 = vsel %vm399, %v243, -3e+38
    %v408 = vsel %vm400, %v248, -3e+38
    %v409 = vsel %vm401, %v253, -3e+38
    %v410 = vsel %vm402, %v258, -3e+38
    %v411 = vrot.slane %v403, 4
    %v412 = vmax.f32 %v403, %v411
    %v413 = vrot.slane %v412, 2
    %v414 = vmax.f32 %v412, %v413
    %v415 = vrot.slane %v414, 1
    %v416 = vmax.f32 %v414, %v415
    %v417 = vrot.slane %v404, 4
    %v418 = vmax.f32 %v404, %v417
    %v419 = vrot.slane %v418, 2
    %v420 = vmax.f32 %v418, %v419
    %v421 = vrot.slane %v420, 1
    %v422 = vmax.f32 %v420, %v421
    %v423 = vrot.slane %v405, 4
    %v424 = vmax.f32 %v405, %v423
    %v425 = vrot.slane %v424, 2
    %v426 = vmax.f32 %v424, %v425
    %v427 = vrot.slane %v426, 1
    %v428 = vmax.f32 %v426, %v427
    %v429 = vrot.slane %v406, 4
    %v430 = vmax.f32 %v406, %v429
    %v431 = vrot.slane %v430, 2
    %v432 = vmax.f32 %v430, %v431
    %v433 = vrot.slane %v432, 1
    %v434 = vmax.f32 %v432, %v433
    %v435 = vrot.slane %v407, 4
    %v436 = vmax.f32 %v407, %v435
    %v437 = vrot.slane %v436, 2
    %v438 = vmax.f32 %v436, %v437
    %v439 = vrot.slane %v438, 1
    %v440 = vmax.f32 %v438, %v439
    %v441 = vrot.slane %v408, 4
    %v442 = vmax.f32 %v408, %v441
    %v443 = vrot.slane %v442, 2
    %v444 = vmax.f32 %v442, %v443
    %v445 = vrot.slane %v444, 1
    %v446 = vmax.f32 %v444, %v445
    %v447 = vrot.slane %v409, 4
    %v448 = vmax.f32 %v409, %v447
    %v449 = vrot.slane %v448, 2
    %v450 = vmax.f32 %v448, %v449
    %v451 = vrot.slane %v450, 1
    %v452 = vmax.f32 %v450, %v451
    %v453 = vrot.slane %v410, 4
    %v454 = vmax.f32 %v410, %v453
    %v455 = vrot.slane %v454, 2
    %v456 = vmax.f32 %v454, %v455
    %v457 = vrot.slane %v456, 1
    %v458 = vmax.f32 %v456, %v457
    %v459 = vmax.f32 %v416, -3e+38
    %v460 = vmax.f32 %v422, -3e+38
    %v461 = vmax.f32 %v428, -3e+38
    %v462 = vmax.f32 %v434, -3e+38
    %v463 = vmax.f32 %v440, -3e+38
    %v464 = vmax.f32 %v446, -3e+38
    %v465 = vmax.f32 %v452, -3e+38
    %v466 = vmax.f32 %v458, -3e+38
    %v467 = vsel %vm347, 1, 0
    %v468 = vsel %vm348, 1, 0
    %v469 = vsel %vm349, 1, 0
    %v470 = vsel %vm350, 1, 0
    %v471 = vsel %vm351, 1, 0
    %v472 = vsel %vm352, 1, 0
    %v473 = vsel %vm353, 1, 0
    %v474 = vsel %vm354, 1, 0
    %475 = vset.pattern.permute.xlu0 0
    %476 = vperm.xlu0 %475, %v467
    %v477 = vpop.permute.xlu0 %476
    %478 = vset.pattern.permute.xlu0 0
    %479 = vperm.xlu0 %478, %v468
    %v480 = vpop.permute.xlu0 %479
    %481 = vset.pattern.permute.xlu0 0
    %482 = vperm.xlu0 %481, %v469
    %v483 = vpop.permute.xlu0 %482
    %484 = vset.pattern.permute.xlu0 0
    %485 = vperm.xlu0 %484, %v470
    %v486 = vpop.permute.xlu0 %485
    %487 = vset.pattern.permute.xlu0 0
    %488 = vperm.xlu0 %487, %v471
    %v489 = vpop.permute.xlu0 %488
    %490 = vset.pattern.permute.xlu0 0
    %491 = vperm.xlu0 %490, %v472
    %v492 = vpop.permute.xlu0 %491
    %493 = vset.pattern.permute.xlu0 0
    %494 = vperm.xlu0 %493, %v473
    %v495 = vpop.permute.xlu0 %494
    %496 = vset.pattern.permute.xlu0 0
    %497 = vperm.xlu0 %496, %v474
    %v498 = vpop.permute.xlu0 %497
    %vm499 = vcmp.eq.s32.totalorder %v477, 1
    %vm500 = vcmp.eq.s32.totalorder %v480, 1
    %vm501 = vcmp.eq.s32.totalorder %v483, 1
    %vm502 = vcmp.eq.s32.totalorder %v486, 1
    %vm503 = vcmp.eq.s32.totalorder %v489, 1
    %vm504 = vcmp.eq.s32.totalorder %v492, 1
    %vm505 = vcmp.eq.s32.totalorder %v495, 1
    %vm506 = vcmp.eq.s32.totalorder %v498, 1
    %v507 = vsel %vm499, %v223, -3e+38
    %v508 = vsel %vm500, %v228, -3e+38
    %v509 = vsel %vm501, %v233, -3e+38
    %v510 = vsel %vm502, %v238, -3e+38
    %v511 = vsel %vm503, %v243, -3e+38
    %v512 = vsel %vm504, %v248, -3e+38
    %v513 = vsel %vm505, %v253, -3e+38
    %v514 = vsel %vm506, %v258, -3e+38
    %v515 = vrot.slane %v507, 4
    %v516 = vmax.f32 %v507, %v515
    %v517 = vrot.slane %v516, 2
    %v518 = vmax.f32 %v516, %v517
    %v519 = vrot.slane %v518, 1
    %v520 = vmax.f32 %v518, %v519
    %v521 = vrot.slane %v508, 4
    %v522 = vmax.f32 %v508, %v521
    %v523 = vrot.slane %v522, 2
    %v524 = vmax.f32 %v522, %v523
    %v525 = vrot.slane %v524, 1
    %v526 = vmax.f32 %v524, %v525
    %v527 = vrot.slane %v509, 4
    %v528 = vmax.f32 %v509, %v527
    %v529 = vrot.slane %v528, 2
    %v530 = vmax.f32 %v528, %v529
    %v531 = vrot.slane %v530, 1
    %v532 = vmax.f32 %v530, %v531
    %v533 = vrot.slane %v510, 4
    %v534 = vmax.f32 %v510, %v533
    %v535 = vrot.slane %v534, 2
    %v536 = vmax.f32 %v534, %v535
    %v537 = vrot.slane %v536, 1
    %v538 = vmax.f32 %v536, %v537
    %v539 = vrot.slane %v511, 4
    %v540 = vmax.f32 %v511, %v539
    %v541 = vrot.slane %v540, 2
    %v542 = vmax.f32 %v540, %v541
    %v543 = vrot.slane %v542, 1
    %v544 = vmax.f32 %v542, %v543
    %v545 = vrot.slane %v512, 4
    %v546 = vmax.f32 %v512, %v545
    %v547 = vrot.slane %v546, 2
    %v548 = vmax.f32 %v546, %v547
    %v549 = vrot.slane %v548, 1
    %v550 = vmax.f32 %v548, %v549
    %v551 = vrot.slane %v513, 4
    %v552 = vmax.f32 %v513, %v551
    %v553 = vrot.slane %v552, 2
    %v554 = vmax.f32 %v552, %v553
    %v555 = vrot.slane %v554, 1
    %v556 = vmax.f32 %v554, %v555
    %v557 = vrot.slane %v514, 4
    %v558 = vmax.f32 %v514, %v557
    %v559 = vrot.slane %v558, 2
    %v560 = vmax.f32 %v558, %v559
    %v561 = vrot.slane %v560, 1
    %v562 = vmax.f32 %v560, %v561
    %v563 = vmax.f32 %v520, -3e+38
    %v564 = vmax.f32 %v526, -3e+38
    %v565 = vmax.f32 %v532, -3e+38
    %v566 = vmax.f32 %v538, -3e+38
    %v567 = vmax.f32 %v544, -3e+38
    %v568 = vmax.f32 %v550, -3e+38
    %v569 = vmax.f32 %v556, -3e+38
    %v570 = vmax.f32 %v562, -3e+38
    %v571 = vsel %vm355, 1, 0
    %v572 = vsel %vm356, 1, 0
    %v573 = vsel %vm357, 1, 0
    %v574 = vsel %vm358, 1, 0
    %v575 = vsel %vm359, 1, 0
    %v576 = vsel %vm360, 1, 0
    %v577 = vsel %vm361, 1, 0
    %v578 = vsel %vm362, 1, 0
    %579 = vset.pattern.permute.xlu0 1
    %580 = vperm.xlu0 %579, %v571
    %v581 = vpop.permute.xlu0 %580
    %582 = vset.pattern.permute.xlu0 1
    %583 = vperm.xlu0 %582, %v572
    %v584 = vpop.permute.xlu0 %583
    %585 = vset.pattern.permute.xlu0 1
    %586 = vperm.xlu0 %585, %v573
    %v587 = vpop.permute.xlu0 %586
    %588 = vset.pattern.permute.xlu0 1
    %589 = vperm.xlu0 %588, %v574
    %v590 = vpop.permute.xlu0 %589
    %591 = vset.pattern.permute.xlu0 1
    %592 = vperm.xlu0 %591, %v575
    %v593 = vpop.permute.xlu0 %592
    %594 = vset.pattern.permute.xlu0 1
    %595 = vperm.xlu0 %594, %v576
    %v596 = vpop.permute.xlu0 %595
    %597 = vset.pattern.permute.xlu0 1
    %598 = vperm.xlu0 %597, %v577
    %v599 = vpop.permute.xlu0 %598
    %600 = vset.pattern.permute.xlu0 1
    %601 = vperm.xlu0 %600, %v578
    %v602 = vpop.permute.xlu0 %601
    %vm603 = vcmp.eq.s32.totalorder %v581, 1
    %vm604 = vcmp.eq.s32.totalorder %v584, 1
    %vm605 = vcmp.eq.s32.totalorder %v587, 1
    %vm606 = vcmp.eq.s32.totalorder %v590, 1
    %vm607 = vcmp.eq.s32.totalorder %v593, 1
    %vm608 = vcmp.eq.s32.totalorder %v596, 1
    %vm609 = vcmp.eq.s32.totalorder %v599, 1
    %vm610 = vcmp.eq.s32.totalorder %v602, 1
    %v611 = vsel %vm603, %v223, -3e+38
    %v612 = vsel %vm604, %v228, -3e+38
    %v613 = vsel %vm605, %v233, -3e+38
    %v614 = vsel %vm606, %v238, -3e+38
    %v615 = vsel %vm607, %v243, -3e+38
    %v616 = vsel %vm608, %v248, -3e+38
    %v617 = vsel %vm609, %v253, -3e+38
    %v618 = vsel %vm610, %v258, -3e+38
    %v619 = vrot.slane %v611, 4
    %v620 = vmax.f32 %v611, %v619
    %v621 = vrot.slane %v620, 2
    %v622 = vmax.f32 %v620, %v621
    %v623 = vrot.slane %v622, 1
    %v624 = vmax.f32 %v622, %v623
    %v625 = vrot.slane %v612, 4
    %v626 = vmax.f32 %v612, %v625
    %v627 = vrot.slane %v626, 2
    %v628 = vmax.f32 %v626, %v627
    %v629 = vrot.slane %v628, 1
    %v630 = vmax.f32 %v628, %v629
    %v631 = vrot.slane %v613, 4
    %v632 = vmax.f32 %v613, %v631
    %v633 = vrot.slane %v632, 2
    %v634 = vmax.f32 %v632, %v633
    %v635 = vrot.slane %v634, 1
    %v636 = vmax.f32 %v634, %v635
    %v637 = vrot.slane %v614, 4
    %v638 = vmax.f32 %v614, %v637
    %v639 = vrot.slane %v638, 2
    %v640 = vmax.f32 %v638, %v639
    %v641 = vrot.slane %v640, 1
    %v642 = vmax.f32 %v640, %v641
    %v643 = vrot.slane %v615, 4
    %v644 = vmax.f32 %v615, %v643
    %v645 = vrot.slane %v644, 2
    %v646 = vmax.f32 %v644, %v645
    %v647 = vrot.slane %v646, 1
    %v648 = vmax.f32 %v646, %v647
    %v649 = vrot.slane %v616, 4
    %v650 = vmax.f32 %v616, %v649
    %v651 = vrot.slane %v650, 2
    %v652 = vmax.f32 %v650, %v651
    %v653 = vrot.slane %v652, 1
    %v654 = vmax.f32 %v652, %v653
    %v655 = vrot.slane %v617, 4
    %v656 = vmax.f32 %v617, %v655
    %v657 = vrot.slane %v656, 2
    %v658 = vmax.f32 %v656, %v657
    %v659 = vrot.slane %v658, 1
    %v660 = vmax.f32 %v658, %v659
    %v661 = vrot.slane %v618, 4
    %v662 = vmax.f32 %v618, %v661
    %v663 = vrot.slane %v662, 2
    %v664 = vmax.f32 %v662, %v663
    %v665 = vrot.slane %v664, 1
    %v666 = vmax.f32 %v664, %v665
    %v667 = vmax.f32 %v624, -3e+38
    %v668 = vmax.f32 %v630, -3e+38
    %v669 = vmax.f32 %v636, -3e+38
    %v670 = vmax.f32 %v642, -3e+38
    %v671 = vmax.f32 %v648, -3e+38
    %v672 = vmax.f32 %v654, -3e+38
    %v673 = vmax.f32 %v660, -3e+38
    %v674 = vmax.f32 %v666, -3e+38
    %v675 = vadd.s32 %v271, 8
    %vm676 = vcmp.lt.s32.totalorder %v675, 8
    %vm677 = vcmp.le.s32.totalorder %v675, %v273
    %vm678 = vcmp.le.s32.totalorder %v675, %v274
    %vm679 = vcmp.le.s32.totalorder %v675, %v275
    %vm680 = vcmp.le.s32.totalorder %v675, %v276
    %vm681 = vcmp.le.s32.totalorder %v675, %v277
    %vm682 = vcmp.le.s32.totalorder %v675, %v278
    %vm683 = vcmp.le.s32.totalorder %v675, %v279
    %vm684 = vcmp.le.s32.totalorder %v675, %v280
    %v685 = vsel %vm676, 1, 0
    %vm686 = vcmp.eq.s32.totalorder %v685, 1
    %vm687 = vmand %vm677, %vm686
    %vm688 = vmand %vm678, %vm686
    %vm689 = vmand %vm679, %vm686
    %vm690 = vmand %vm680, %vm686
    %vm691 = vmand %vm681, %vm686
    %vm692 = vmand %vm682, %vm686
    %vm693 = vmand %vm683, %vm686
    %vm694 = vmand %vm684, %vm686
    %vm695 = vcmp.ge.s32.totalorder %v675, %v273
    %vm696 = vcmp.ge.s32.totalorder %v675, %v274
    %vm697 = vcmp.ge.s32.totalorder %v675, %v275
    %vm698 = vcmp.ge.s32.totalorder %v675, %v276
    %vm699 = vcmp.ge.s32.totalorder %v675, %v277
    %vm700 = vcmp.ge.s32.totalorder %v675, %v278
    %vm701 = vcmp.ge.s32.totalorder %v675, %v279
    %vm702 = vcmp.ge.s32.totalorder %v675, %v280
    %v703 = vsel %vm677, 1, 0
    %v704 = vsel %vm678, 1, 0
    %v705 = vsel %vm679, 1, 0
    %v706 = vsel %vm680, 1, 0
    %v707 = vsel %vm681, 1, 0
    %v708 = vsel %vm682, 1, 0
    %v709 = vsel %vm683, 1, 0
    %v710 = vsel %vm684, 1, 0
    %711 = vrot.lane.b32.xlu0 %v703, 127
    %v712 = vpop.permute.xlu0 %711
    %713 = vrot.lane.b32.xlu0 %v704, 127
    %v714 = vpop.permute.xlu0 %713
    %715 = vrot.lane.b32.xlu0 %v705, 127
    %v716 = vpop.permute.xlu0 %715
    %717 = vrot.lane.b32.xlu0 %v706, 127
    %v718 = vpop.permute.xlu0 %717
    %719 = vrot.lane.b32.xlu0 %v707, 127
    %v720 = vpop.permute.xlu0 %719
    %721 = vrot.lane.b32.xlu0 %v708, 127
    %v722 = vpop.permute.xlu0 %721
    %723 = vrot.lane.b32.xlu0 %v709, 127
    %v724 = vpop.permute.xlu0 %723
    %725 = vrot.lane.b32.xlu0 %v710, 127
    %v726 = vpop.permute.xlu0 %725
    %vm727 = vcmp.ne.s32.totalorder %v712, 0
    %vm728 = vcmp.ne.s32.totalorder %v714, 0
    %vm729 = vcmp.ne.s32.totalorder %v716, 0
    %vm730 = vcmp.ne.s32.totalorder %v718, 0
    %vm731 = vcmp.ne.s32.totalorder %v720, 0
    %vm732 = vcmp.ne.s32.totalorder %v722, 0
    %vm733 = vcmp.ne.s32.totalorder %v724, 0
    %vm734 = vcmp.ne.s32.totalorder %v726, 0
    %vm735 = vmand %vm695, %vm727
    %vm736 = vmand %vm696, %vm728
    %vm737 = vmand %vm697, %vm729
    %vm738 = vmand %vm698, %vm730
    %vm739 = vmand %vm699, %vm731
    %vm740 = vmand %vm700, %vm732
    %vm741 = vmand %vm701, %vm733
    %vm742 = vmand %vm702, %vm734
    %vm743 = vmand %vm735, %vm686
    %vm744 = vmand %vm736, %vm686
    %vm745 = vmand %vm737, %vm686
    %vm746 = vmand %vm738, %vm686
    %vm747 = vmand %vm739, %vm686
    %vm748 = vmand %vm740, %vm686
    %vm749 = vmand %vm741, %vm686
    %vm750 = vmand %vm742, %vm686
    %vm751 = vmand %vm695, %vm686
    %vm752 = vmand %vm696, %vm686
    %vm753 = vmand %vm697, %vm686
    %vm754 = vmand %vm698, %vm686
    %vm755 = vmand %vm699, %vm686
    %vm756 = vmand %vm700, %vm686
    %vm757 = vmand %vm701, %vm686
    %vm758 = vmand %vm702, %vm686
    %v759 = vsel %vm687, 1, 0
    %v760 = vsel %vm688, 1, 0
    %v761 = vsel %vm689, 1, 0
    %v762 = vsel %vm690, 1, 0
    %v763 = vsel %vm691, 1, 0
    %v764 = vsel %vm692, 1, 0
    %v765 = vsel %vm693, 1, 0
    %v766 = vsel %vm694, 1, 0
    %767 = vset.pattern.permute.xlu0 0
    %768 = vperm.xlu0 %767, %v759
    %v769 = vpop.permute.xlu0 %768
    %770 = vset.pattern.permute.xlu0 0
    %771 = vperm.xlu0 %770, %v760
    %v772 = vpop.permute.xlu0 %771
    %773 = vset.pattern.permute.xlu0 0
    %774 = vperm.xlu0 %773, %v761
    %v775 = vpop.permute.xlu0 %774
    %776 = vset.pattern.permute.xlu0 0
    %777 = vperm.xlu0 %776, %v762
    %v778 = vpop.permute.xlu0 %777
    %779 = vset.pattern.permute.xlu0 0
    %780 = vperm.xlu0 %779, %v763
    %v781 = vpop.permute.xlu0 %780
    %782 = vset.pattern.permute.xlu0 0
    %783 = vperm.xlu0 %782, %v764
    %v784 = vpop.permute.xlu0 %783
    %785 = vset.pattern.permute.xlu0 0
    %786 = vperm.xlu0 %785, %v765
    %v787 = vpop.permute.xlu0 %786
    %788 = vset.pattern.permute.xlu0 0
    %789 = vperm.xlu0 %788, %v766
    %v790 = vpop.permute.xlu0 %789
    %vm791 = vcmp.eq.s32.totalorder %v769, 1
    %vm792 = vcmp.eq.s32.totalorder %v772, 1
    %vm793 = vcmp.eq.s32.totalorder %v775, 1
    %vm794 = vcmp.eq.s32.totalorder %v778, 1
    %vm795 = vcmp.eq.s32.totalorder %v781, 1
    %vm796 = vcmp.eq.s32.totalorder %v784, 1
    %vm797 = vcmp.eq.s32.totalorder %v787, 1
    %vm798 = vcmp.eq.s32.totalorder %v790, 1
    %v799 = vsel %vm791, %v225, -3e+38
    %v800 = vsel %vm792, %v230, -3e+38
    %v801 = vsel %vm793, %v235, -3e+38
    %v802 = vsel %vm794, %v240, -3e+38
    %v803 = vsel %vm795, %v245, -3e+38
    %v804 = vsel %vm796, %v250, -3e+38
    %v805 = vsel %vm797, %v255, -3e+38
    %v806 = vsel %vm798, %v260, -3e+38
    %v807 = vrot.slane %v799, 4
    %v808 = vmax.f32 %v799, %v807
    %v809 = vrot.slane %v808, 2
    %v810 = vmax.f32 %v808, %v809
    %v811 = vrot.slane %v810, 1
    %v812 = vmax.f32 %v810, %v811
    %v813 = vrot.slane %v800, 4
    %v814 = vmax.f32 %v800, %v813
    %v815 = vrot.slane %v814, 2
    %v816 = vmax.f32 %v814, %v815
    %v817 = vrot.slane %v816, 1
    %v818 = vmax.f32 %v816, %v817
    %v819 = vrot.slane %v801, 4
    %v820 = vmax.f32 %v801, %v819
    %v821 = vrot.slane %v820, 2
    %v822 = vmax.f32 %v820, %v821
    %v823 = vrot.slane %v822, 1
    %v824 = vmax.f32 %v822, %v823
    %v825 = vrot.slane %v802, 4
    %v826 = vmax.f32 %v802, %v825
    %v827 = vrot.slane %v826, 2
    %v828 = vmax.f32 %v826, %v827
    %v829 = vrot.slane %v828, 1
    %v830 = vmax.f32 %v828, %v829
    %v831 = vrot.slane %v803, 4
    %v832 = vmax.f32 %v803, %v831
    %v833 = vrot.slane %v832, 2
    %v834 = vmax.f32 %v832, %v833
    %v835 = vrot.slane %v834, 1
    %v836 = vmax.f32 %v834, %v835
    %v837 = vrot.slane %v804, 4
    %v838 = vmax.f32 %v804, %v837
    %v839 = vrot.slane %v838, 2
    %v840 = vmax.f32 %v838, %v839
    %v841 = vrot.slane %v840, 1
    %v842 = vmax.f32 %v840, %v841
    %v843 = vrot.slane %v805, 4
    %v844 = vmax.f32 %v805, %v843
    %v845 = vrot.slane %v844, 2
    %v846 = vmax.f32 %v844, %v845
    %v847 = vrot.slane %v846, 1
    %v848 = vmax.f32 %v846, %v847
    %v849 = vrot.slane %v806, 4
    %v850 = vmax.f32 %v806, %v849
    %v851 = vrot.slane %v850, 2
    %v852 = vmax.f32 %v850, %v851
    %v853 = vrot.slane %v852, 1
    %v854 = vmax.f32 %v852, %v853
    %v855 = vmax.f32 %v459, %v812
    %v856 = vmax.f32 %v460, %v818
    %v857 = vmax.f32 %v461, %v824
    %v858 = vmax.f32 %v462, %v830
    %v859 = vmax.f32 %v463, %v836
    %v860 = vmax.f32 %v464, %v842
    %v861 = vmax.f32 %v465, %v848
    %v862 = vmax.f32 %v466, %v854
    %v863 = vsel %vm743, 1, 0
    %v864 = vsel %vm744, 1, 0
    %v865 = vsel %vm745, 1, 0
    %v866 = vsel %vm746, 1, 0
    %v867 = vsel %vm747, 1, 0
    %v868 = vsel %vm748, 1, 0
    %v869 = vsel %vm749, 1, 0
    %v870 = vsel %vm750, 1, 0
    %871 = vset.pattern.permute.xlu0 0
    %872 = vperm.xlu0 %871, %v863
    %v873 = vpop.permute.xlu0 %872
    %874 = vset.pattern.permute.xlu0 0
    %875 = vperm.xlu0 %874, %v864
    %v876 = vpop.permute.xlu0 %875
    %877 = vset.pattern.permute.xlu0 0
    %878 = vperm.xlu0 %877, %v865
    %v879 = vpop.permute.xlu0 %878
    %880 = vset.pattern.permute.xlu0 0
    %881 = vperm.xlu0 %880, %v866
    %v882 = vpop.permute.xlu0 %881
    %883 = vset.pattern.permute.xlu0 0
    %884 = vperm.xlu0 %883, %v867
    %v885 = vpop.permute.xlu0 %884
    %886 = vset.pattern.permute.xlu0 0
    %887 = vperm.xlu0 %886, %v868
    %v888 = vpop.permute.xlu0 %887
    %889 = vset.pattern.permute.xlu0 0
    %890 = vperm.xlu0 %889, %v869
    %v891 = vpop.permute.xlu0 %890
    %892 = vset.pattern.permute.xlu0 0
    %893 = vperm.xlu0 %892, %v870
    %v894 = vpop.permute.xlu0 %893
    %vm895 = vcmp.eq.s32.totalorder %v873, 1
    %vm896 = vcmp.eq.s32.totalorder %v876, 1
    %vm897 = vcmp.eq.s32.totalorder %v879, 1
    %vm898 = vcmp.eq.s32.totalorder %v882, 1
    %vm899 = vcmp.eq.s32.totalorder %v885, 1
    %vm900 = vcmp.eq.s32.totalorder %v888, 1
    %vm901 = vcmp.eq.s32.totalorder %v891, 1
    %vm902 = vcmp.eq.s32.totalorder %v894, 1
    %v903 = vsel %vm895, %v225, -3e+38
    %v904 = vsel %vm896, %v230, -3e+38
    %v905 = vsel %vm897, %v235, -3e+38
    %v906 = vsel %vm898, %v240, -3e+38
    %v907 = vsel %vm899, %v245, -3e+38
    %v908 = vsel %vm900, %v250, -3e+38
    %v909 = vsel %vm901, %v255, -3e+38
    %v910 = vsel %vm902, %v260, -3e+38
    %v911 = vrot.slane %v903, 4
    %v912 = vmax.f32 %v903, %v911
    %v913 = vrot.slane %v912, 2
    %v914 = vmax.f32 %v912, %v913
    %v915 = vrot.slane %v914, 1
    %v916 = vmax.f32 %v914, %v915
    %v917 = vrot.slane %v904, 4
    %v918 = vmax.f32 %v904, %v917
    %v919 = vrot.slane %v918, 2
    %v920 = vmax.f32 %v918, %v919
    %v921 = vrot.slane %v920, 1
    %v922 = vmax.f32 %v920, %v921
    %v923 = vrot.slane %v905, 4
    %v924 = vmax.f32 %v905, %v923
    %v925 = vrot.slane %v924, 2
    %v926 = vmax.f32 %v924, %v925
    %v927 = vrot.slane %v926, 1
    %v928 = vmax.f32 %v926, %v927
    %v929 = vrot.slane %v906, 4
    %v930 = vmax.f32 %v906, %v929
    %v931 = vrot.slane %v930, 2
    %v932 = vmax.f32 %v930, %v931
    %v933 = vrot.slane %v932, 1
    %v934 = vmax.f32 %v932, %v933
    %v935 = vrot.slane %v907, 4
    %v936 = vmax.f32 %v907, %v935
    %v937 = vrot.slane %v936, 2
    %v938 = vmax.f32 %v936, %v937
    %v939 = vrot.slane %v938, 1
    %v940 = vmax.f32 %v938, %v939
    %v941 = vrot.slane %v908, 4
    %v942 = vmax.f32 %v908, %v941
    %v943 = vrot.slane %v942, 2
    %v944 = vmax.f32 %v942, %v943
    %v945 = vrot.slane %v944, 1
    %v946 = vmax.f32 %v944, %v945
    %v947 = vrot.slane %v909, 4
    %v948 = vmax.f32 %v909, %v947
    %v949 = vrot.slane %v948, 2
    %v950 = vmax.f32 %v948, %v949
    %v951 = vrot.slane %v950, 1
    %v952 = vmax.f32 %v950, %v951
    %v953 = vrot.slane %v910, 4
    %v954 = vmax.f32 %v910, %v953
    %v955 = vrot.slane %v954, 2
    %v956 = vmax.f32 %v954, %v955
    %v957 = vrot.slane %v956, 1
    %v958 = vmax.f32 %v956, %v957
    %v959 = vmax.f32 %v563, %v916
    %v960 = vmax.f32 %v564, %v922
    %v961 = vmax.f32 %v565, %v928
    %v962 = vmax.f32 %v566, %v934
    %v963 = vmax.f32 %v567, %v940
    %v964 = vmax.f32 %v568, %v946
    %v965 = vmax.f32 %v569, %v952
    %v966 = vmax.f32 %v570, %v958
    %v967 = vsel %vm751, 1, 0
    %v968 = vsel %vm752, 1, 0
    %v969 = vsel %vm753, 1, 0
    %v970 = vsel %vm754, 1, 0
    %v971 = vsel %vm755, 1, 0
    %v972 = vsel %vm756, 1, 0
    %v973 = vsel %vm757, 1, 0
    %v974 = vsel %vm758, 1, 0
    %975 = vset.pattern.permute.xlu0 1
    %976 = vperm.xlu0 %975, %v967
    %v977 = vpop.permute.xlu0 %976
    %978 = vset.pattern.permute.xlu0 1
    %979 = vperm.xlu0 %978, %v968
    %v980 = vpop.permute.xlu0 %979
    %981 = vset.pattern.permute.xlu0 1
    %982 = vperm.xlu0 %981, %v969
    %v983 = vpop.permute.xlu0 %982
    %984 = vset.pattern.permute.xlu0 1
    %985 = vperm.xlu0 %984, %v970
    %v986 = vpop.permute.xlu0 %985
    %987 = vset.pattern.permute.xlu0 1
    %988 = vperm.xlu0 %987, %v971
    %v989 = vpop.permute.xlu0 %988
    %990 = vset.pattern.permute.xlu0 1
    %991 = vperm.xlu0 %990, %v972
    %v992 = vpop.permute.xlu0 %991
    %993 = vset.pattern.permute.xlu0 1
    %994 = vperm.xlu0 %993, %v973
    %v995 = vpop.permute.xlu0 %994
    %996 = vset.pattern.permute.xlu0 1
    %997 = vperm.xlu0 %996, %v974
    %v998 = vpop.permute.xlu0 %997
    %vm999 = vcmp.eq.s32.totalorder %v977, 1
    %vm1000 = vcmp.eq.s32.totalorder %v980, 1
    %vm1001 = vcmp.eq.s32.totalorder %v983, 1
    %vm1002 = vcmp.eq.s32.totalorder %v986, 1
    %vm1003 = vcmp.eq.s32.totalorder %v989, 1
    %vm1004 = vcmp.eq.s32.totalorder %v992, 1
    %vm1005 = vcmp.eq.s32.totalorder %v995, 1
    %vm1006 = vcmp.eq.s32.totalorder %v998, 1
    %v1007 = vsel %vm999, %v225, -3e+38
    %v1008 = vsel %vm1000, %v230, -3e+38
    %v1009 = vsel %vm1001, %v235, -3e+38
    %v1010 = vsel %vm1002, %v240, -3e+38
    %v1011 = vsel %vm1003, %v245, -3e+38
    %v1012 = vsel %vm1004, %v250, -3e+38
    %v1013 = vsel %vm1005, %v255, -3e+38
    %v1014 = vsel %vm1006, %v260, -3e+38
    %v1015 = vrot.slane %v1007, 4
    %v1016 = vmax.f32 %v1007, %v1015
    %v1017 = vrot.slane %v1016, 2
    %v1018 = vmax.f32 %v1016, %v1017
    %v1019 = vrot.slane %v1018, 1
    %v1020 = vmax.f32 %v1018, %v1019
    %v1021 = vrot.slane %v1008, 4
    %v1022 = vmax.f32 %v1008, %v1021
    %v1023 = vrot.slane %v1022, 2
    %v1024 = vmax.f32 %v1022, %v1023
    %v1025 = vrot.slane %v1024, 1
    %v1026 = vmax.f32 %v1024, %v1025
    %v1027 = vrot.slane %v1009, 4
    %v1028 = vmax.f32 %v1009, %v1027
    %v1029 = vrot.slane %v1028, 2
    %v1030 = vmax.f32 %v1028, %v1029
    %v1031 = vrot.slane %v1030, 1
    %v1032 = vmax.f32 %v1030, %v1031
    %v1033 = vrot.slane %v1010, 4
    %v1034 = vmax.f32 %v1010, %v1033
    %v1035 = vrot.slane %v1034, 2
    %v1036 = vmax.f32 %v1034, %v1035
    %v1037 = vrot.slane %v1036, 1
    %v1038 = vmax.f32 %v1036, %v1037
    %v1039 = vrot.slane %v1011, 4
    %v1040 = vmax.f32 %v1011, %v1039
    %v1041 = vrot.slane %v1040, 2
    %v1042 = vmax.f32 %v1040, %v1041
    %v1043 = vrot.slane %v1042, 1
    %v1044 = vmax.f32 %v1042, %v1043
    %v1045 = vrot.slane %v1012, 4
    %v1046 = vmax.f32 %v1012, %v1045
    %v1047 = vrot.slane %v1046, 2
    %v1048 = vmax.f32 %v1046, %v1047
    %v1049 = vrot.slane %v1048, 1
    %v1050 = vmax.f32 %v1048, %v1049
    %v1051 = vrot.slane %v1013, 4
    %v1052 = vmax.f32 %v1013, %v1051
    %v1053 = vrot.slane %v1052, 2
    %v1054 = vmax.f32 %v1052, %v1053
    %v1055 = vrot.slane %v1054, 1
    %v1056 = vmax.f32 %v1054, %v1055
    %v1057 = vrot.slane %v1014, 4
    %v1058 = vmax.f32 %v1014, %v1057
    %v1059 = vrot.slane %v1058, 2
    %v1060 = vmax.f32 %v1058, %v1059
    %v1061 = vrot.slane %v1060, 1
    %v1062 = vmax.f32 %v1060, %v1061
    %v1063 = vmax.f32 %v667, %v1020
    %v1064 = vmax.f32 %v668, %v1026
    %v1065 = vmax.f32 %v669, %v1032
    %v1066 = vmax.f32 %v670, %v1038
    %v1067 = vmax.f32 %v671, %v1044
    %v1068 = vmax.f32 %v672, %v1050
    %v1069 = vmax.f32 %v673, %v1056
    %v1070 = vmax.f32 %v674, %v1062
    %v1071 = vld [vmem:[%s3] sm:$0x1]
    %v1073 = vperm.slane %v1071, 0
    %v1075 = vadd.f32 %v855, %v1073
    %v1076 = vadd.f32 %v856, %v1073
    %v1077 = vadd.f32 %v857, %v1073
    %v1078 = vadd.f32 %v858, %v1073
    %v1079 = vadd.f32 %v859, %v1073
    %v1080 = vadd.f32 %v860, %v1073
    %v1081 = vadd.f32 %v861, %v1073
    %v1082 = vadd.f32 %v862, %v1073
    %v1083 = vtanh.pop %v1075
    %v1084 = vtanh.pop %v1076
    %v1085 = vtanh.pop %v1077
    %v1086 = vtanh.pop %v1078
    %v1087 = vtanh.pop %v1079
    %v1088 = vtanh.pop %v1080
    %v1089 = vtanh.pop %v1081
    %v1090 = vtanh.pop %v1082
    %v1091 = vpack.c.bf16 %v1083, %v1083
    %v1092 = vpack.c.bf16 %v1084, %v1084
    %v1093 = vpack.c.bf16 %v1085, %v1085
    %v1094 = vpack.c.bf16 %v1086, %v1086
    %v1095 = vpack.c.bf16 %v1087, %v1087
    %v1096 = vpack.c.bf16 %v1088, %v1088
    %v1097 = vpack.c.bf16 %v1089, %v1089
    %v1098 = vpack.c.bf16 %v1090, %v1090
    %v1099 = vadd.f32 %v959, %v1073
    %v1100 = vadd.f32 %v960, %v1073
    %v1101 = vadd.f32 %v961, %v1073
    %v1102 = vadd.f32 %v962, %v1073
    %v1103 = vadd.f32 %v963, %v1073
    %v1104 = vadd.f32 %v964, %v1073
    %v1105 = vadd.f32 %v965, %v1073
    %v1106 = vadd.f32 %v966, %v1073
    %v1107 = vtanh.pop %v1099
    %v1108 = vtanh.pop %v1100
    %v1109 = vtanh.pop %v1101
    %v1110 = vtanh.pop %v1102
    %v1111 = vtanh.pop %v1103
    %v1112 = vtanh.pop %v1104
    %v1113 = vtanh.pop %v1105
    %v1114 = vtanh.pop %v1106
    %v1115 = vpack.c.bf16 %v1107, %v1107
    %v1116 = vpack.c.bf16 %v1108, %v1108
    %v1117 = vpack.c.bf16 %v1109, %v1109
    %v1118 = vpack.c.bf16 %v1110, %v1110
    %v1119 = vpack.c.bf16 %v1111, %v1111
    %v1120 = vpack.c.bf16 %v1112, %v1112
    %v1121 = vpack.c.bf16 %v1113, %v1113
    %v1122 = vpack.c.bf16 %v1114, %v1114
    %v1123 = vadd.f32 %v1063, %v1073
    %v1124 = vadd.f32 %v1064, %v1073
    %v1125 = vadd.f32 %v1065, %v1073
    %v1126 = vadd.f32 %v1066, %v1073
    %v1127 = vadd.f32 %v1067, %v1073
    %v1128 = vadd.f32 %v1068, %v1073
    %v1129 = vadd.f32 %v1069, %v1073
    %v1130 = vadd.f32 %v1070, %v1073
    %v1131 = vtanh.pop %v1123
    %v1132 = vtanh.pop %v1124
    %v1133 = vtanh.pop %v1125
    %v1134 = vtanh.pop %v1126
    %v1135 = vtanh.pop %v1127
    %v1136 = vtanh.pop %v1128
    %v1137 = vtanh.pop %v1129
    %v1138 = vtanh.pop %v1130
    %v1139 = vpack.c.bf16 %v1131, %v1131
    %v1140 = vpack.c.bf16 %v1132, %v1132
    %v1141 = vpack.c.bf16 %v1133, %v1133
    %v1142 = vpack.c.bf16 %v1134, %v1134
    %v1143 = vpack.c.bf16 %v1135, %v1135
    %v1144 = vpack.c.bf16 %v1136, %v1136
    %v1145 = vpack.c.bf16 %v1137, %v1137
    %v1146 = vpack.c.bf16 %v1138, %v1138
    %v1147 = vld [vmem:[#allocation8] sm:$0xf]
    %v1148 = vld [vmem:[#allocation8 + $0x4] sm:$0xf]
    %v1149 = vld [vmem:[#allocation8 + $0x8] sm:$0xf]
    %v1150 = vld [vmem:[#allocation8 + $0xc] sm:$0xf]
    %v1151 = vld [vmem:[#allocation8 + $0x10] sm:$0xf]
    %v1152 = vld [vmem:[#allocation8 + $0x14] sm:$0xf]
    %v1153 = vld [vmem:[#allocation8 + $0x18] sm:$0xf]
    %v1154 = vld [vmem:[#allocation8 + $0x1c] sm:$0xf]
    %v1155 = vld [vmem:[#allocation8 + $0x20] sm:$0xf]
    %v1156 = vld [vmem:[#allocation8 + $0x24] sm:$0xf]
    %v1157 = vld [vmem:[#allocation8 + $0x28] sm:$0xf]
    %v1158 = vld [vmem:[#allocation8 + $0x2c] sm:$0xf]
    %v1159 = vld [vmem:[#allocation8 + $0x30] sm:$0xf]
    %v1160 = vld [vmem:[#allocation8 + $0x34] sm:$0xf]
    %v1161 = vld [vmem:[#allocation8 + $0x38] sm:$0xf]
    %v1162 = vld [vmem:[#allocation8 + $0x3c] sm:$0xf]
    %s1163 = scalar_lea.vmem [#allocation8], 64
    %v1164 = vld [vmem:[%s1163] sm:$0xf]
    %v1165 = vld [vmem:[%s1163 + $0x4] sm:$0xf]
    %v1166 = vld [vmem:[%s1163 + $0x8] sm:$0xf]
    %v1167 = vld [vmem:[%s1163 + $0xc] sm:$0xf]
    %v1168 = vld [vmem:[%s1163 + $0x10] sm:$0xf]
    %v1169 = vld [vmem:[%s1163 + $0x14] sm:$0xf]
    %v1170 = vld [vmem:[%s1163 + $0x18] sm:$0xf]
    %v1171 = vld [vmem:[%s1163 + $0x1c] sm:$0xf]
    %v1172 = vld [vmem:[%s1163 + $0x20] sm:$0xf]
    %v1173 = vld [vmem:[%s1163 + $0x24] sm:$0xf]
    %v1174 = vld [vmem:[%s1163 + $0x28] sm:$0xf]
    %v1175 = vld [vmem:[%s1163 + $0x2c] sm:$0xf]
    %v1176 = vld [vmem:[%s1163 + $0x30] sm:$0xf]
    %v1177 = vld [vmem:[%s1163 + $0x34] sm:$0xf]
    %v1178 = vld [vmem:[%s1163 + $0x38] sm:$0xf]
    %v1179 = vld [vmem:[%s1163 + $0x3c] sm:$0xf]
    %v1188 = vunpack.c.l.b16 %v1115
    %v1189 = vunpack.c.l.b16 %v1116
    %v1190 = vunpack.c.l.b16 %v1117
    %v1191 = vunpack.c.l.b16 %v1118
    %v1192 = vunpack.c.l.b16 %v1119
    %v1193 = vunpack.c.l.b16 %v1120
    %v1194 = vunpack.c.l.b16 %v1121
    %v1195 = vunpack.c.l.b16 %v1122
    %v1196 = vrot.slane %v1189, 7
    %vm1197 = vcmask 1041409
    %v1198 = vsel %vm1197, %v1196, %v1188
    %v1199 = vrot.slane %v1190, 6
    %vm1200 = vcmask 1042434
    %v1201 = vsel %vm1200, %v1199, %v1198
    %v1202 = vrot.slane %v1191, 5
    %vm1203 = vcmask 1043459
    %v1204 = vsel %vm1203, %v1202, %v1201
    %v1205 = vrot.slane %v1192, 4
    %vm1206 = vcmask 1044484
    %v1207 = vsel %vm1206, %v1205, %v1204
    %v1208 = vrot.slane %v1193, 3
    %vm1209 = vcmask 1045509
    %v1210 = vsel %vm1209, %v1208, %v1207
    %v1211 = vrot.slane %v1194, 2
    %vm1212 = vcmask 1046534
    %v1213 = vsel %vm1212, %v1211, %v1210
    %v1214 = vrot.slane %v1195, 1
    %vm1215 = vcmask 1047559
    %v1216 = vsel %vm1215, %v1214, %v1213
    %v1217 = vpack.c.b16 %v1216, %v1216
    %v1235 = vunpack.c.l.b16 %v1164
    %v1236 = vunpack.c.l.b16 %v1165
    %v1237 = vunpack.c.l.b16 %v1166
    %v1238 = vunpack.c.l.b16 %v1167
    %v1239 = vunpack.c.l.b16 %v1168
    %v1240 = vunpack.c.l.b16 %v1169
    %v1241 = vunpack.c.l.b16 %v1170
    %v1242 = vunpack.c.l.b16 %v1171
    %v1243 = vunpack.c.l.b16 %v1172
    %v1244 = vunpack.c.l.b16 %v1173
    %v1245 = vunpack.c.l.b16 %v1174
    %v1246 = vunpack.c.l.b16 %v1175
    %v1247 = vunpack.c.l.b16 %v1176
    %v1248 = vunpack.c.l.b16 %v1177
    %v1249 = vunpack.c.l.b16 %v1178
    %v1250 = vunpack.c.l.b16 %v1179
    %v1251 = vpack.c.b16 %v1236, %v1235
    %v1252 = vpack.c.b16 %v1238, %v1237
    %v1253 = vpack.c.b16 %v1240, %v1239
    %v1254 = vpack.c.b16 %v1242, %v1241
    %v1255 = vpack.c.b16 %v1244, %v1243
    %v1256 = vpack.c.b16 %v1246, %v1245
    %v1257 = vpack.c.b16 %v1248, %v1247
    %v1258 = vpack.c.b16 %v1250, %v1249
    %1267 = vmatpush.bf16.msra.mxu0 %v1258
    %1268 = vmatpush.bf16.msra.mxu0 %v1257
    %1269 = vmatpush.bf16.msra.mxu0 %v1256
    %1270 = vmatpush.bf16.msra.mxu0 %v1255
    %1271 = vmatpush.bf16.msra.mxu0 %v1254
    %1272 = vmatpush.bf16.msra.mxu0 %v1253
    %1273 = vmatpush.bf16.msra.mxu0 %v1252
    %1274 = vmatpush.bf16.msra.mxu0 %v1251
    %1275 = vmatmul.bf16.gmra.mxu0 %v1217
    %v1276 = vpop.f32.mrf.mxu0
    %v1277 = vadd.f32 0.0, %v1276
    %v1278 = vpop.f32.mrf.mxu0
    %1279 = vdwg.mxu0
    %v1288 = vunpack.c.l.b16 %v1091
    %v1289 = vunpack.c.l.b16 %v1092
    %v1290 = vunpack.c.l.b16 %v1093
    %v1291 = vunpack.c.l.b16 %v1094
    %v1292 = vunpack.c.l.b16 %v1095
    %v1293 = vunpack.c.l.b16 %v1096
    %v1294 = vunpack.c.l.b16 %v1097
    %v1295 = vunpack.c.l.b16 %v1098
    %v1296 = vrot.slane %v1289, 7
    %v1297 = vsel %vm1197, %v1296, %v1288
    %v1298 = vrot.slane %v1290, 6
    %v1299 = vsel %vm1200, %v1298, %v1297
    %v1300 = vrot.slane %v1291, 5
    %v1301 = vsel %vm1203, %v1300, %v1299
    %v1302 = vrot.slane %v1292, 4
    %v1303 = vsel %vm1206, %v1302, %v1301
    %v1304 = vrot.slane %v1293, 3
    %v1305 = vsel %vm1209, %v1304, %v1303
    %v1306 = vrot.slane %v1294, 2
    %v1307 = vsel %vm1212, %v1306, %v1305
    %v1308 = vrot.slane %v1295, 1
    %v1309 = vsel %vm1215, %v1308, %v1307
    %v1310 = vpack.c.b16 %v1309, %v1309
    %v1328 = vunpack.c.l.b16 %v1147
    %v1329 = vunpack.c.l.b16 %v1148
    %v1330 = vunpack.c.l.b16 %v1149
    %v1331 = vunpack.c.l.b16 %v1150
    %v1332 = vunpack.c.l.b16 %v1151
    %v1333 = vunpack.c.l.b16 %v1152
    %v1334 = vunpack.c.l.b16 %v1153
    %v1335 = vunpack.c.l.b16 %v1154
    %v1336 = vunpack.c.l.b16 %v1155
    %v1337 = vunpack.c.l.b16 %v1156
    %v1338 = vunpack.c.l.b16 %v1157
    %v1339 = vunpack.c.l.b16 %v1158
    %v1340 = vunpack.c.l.b16 %v1159
    %v1341 = vunpack.c.l.b16 %v1160
    %v1342 = vunpack.c.l.b16 %v1161
    %v1343 = vunpack.c.l.b16 %v1162
    %v1344 = vpack.c.b16 %v1329, %v1328
    %v1345 = vpack.c.b16 %v1331, %v1330
    %v1346 = vpack.c.b16 %v1333, %v1332
    %v1347 = vpack.c.b16 %v1335, %v1334
    %v1348 = vpack.c.b16 %v1337, %v1336
    %v1349 = vpack.c.b16 %v1339, %v1338
    %v1350 = vpack.c.b16 %v1341, %v1340
    %v1351 = vpack.c.b16 %v1343, %v1342
    %1360 = vmatpush.bf16.msra.mxu0 %v1351
    %1361 = vmatpush.bf16.msra.mxu0 %v1350
    %1362 = vmatpush.bf16.msra.mxu0 %v1349
    %1363 = vmatpush.bf16.msra.mxu0 %v1348
    %1364 = vmatpush.bf16.msra.mxu0 %v1347
    %1365 = vmatpush.bf16.msra.mxu0 %v1346
    %1366 = vmatpush.bf16.msra.mxu0 %v1345
    %1367 = vmatpush.bf16.msra.mxu0 %v1344
    %1368 = vmatmul.bf16.gmra.mxu0 %v1310
    %v1369 = vpop.f32.mrf.mxu0
    %v1370 = vadd.f32 %v1277, %v1369
    %v1371 = vpop.f32.mrf.mxu0
    %1372 = vdwg.mxu0
    %s1373 = scalar_lea.vmem [#allocation8], 128
    %v1374 = vld [vmem:[%s1373] sm:$0xf]
    %v1375 = vld [vmem:[%s1373 + $0x4] sm:$0xf]
    %v1376 = vld [vmem:[%s1373 + $0x8] sm:$0xf]
    %v1377 = vld [vmem:[%s1373 + $0xc] sm:$0xf]
    %v1378 = vld [vmem:[%s1373 + $0x10] sm:$0xf]
    %v1379 = vld [vmem:[%s1373 + $0x14] sm:$0xf]
    %v1380 = vld [vmem:[%s1373 + $0x18] sm:$0xf]
    %v1381 = vld [vmem:[%s1373 + $0x1c] sm:$0xf]
    %v1382 = vld [vmem:[%s1373 + $0x20] sm:$0xf]
    %v1383 = vld [vmem:[%s1373 + $0x24] sm:$0xf]
    %v1384 = vld [vmem:[%s1373 + $0x28] sm:$0xf]
    %v1385 = vld [vmem:[%s1373 + $0x2c] sm:$0xf]
    %v1386 = vld [vmem:[%s1373 + $0x30] sm:$0xf]
    %v1387 = vld [vmem:[%s1373 + $0x34] sm:$0xf]
    %v1388 = vld [vmem:[%s1373 + $0x38] sm:$0xf]
    %v1389 = vld [vmem:[%s1373 + $0x3c] sm:$0xf]
    %v1398 = vunpack.c.l.b16 %v1139
    %v1399 = vunpack.c.l.b16 %v1140
    %v1400 = vunpack.c.l.b16 %v1141
    %v1401 = vunpack.c.l.b16 %v1142
    %v1402 = vunpack.c.l.b16 %v1143
    %v1403 = vunpack.c.l.b16 %v1144
    %v1404 = vunpack.c.l.b16 %v1145
    %v1405 = vunpack.c.l.b16 %v1146
    %v1406 = vrot.slane %v1399, 7
    %v1407 = vsel %vm1197, %v1406, %v1398
    %v1408 = vrot.slane %v1400, 6
    %v1409 = vsel %vm1200, %v1408, %v1407
    %v1410 = vrot.slane %v1401, 5
    %v1411 = vsel %vm1203, %v1410, %v1409
    %v1412 = vrot.slane %v1402, 4
    %v1413 = vsel %vm1206, %v1412, %v1411
    %v1414 = vrot.slane %v1403, 3
    %v1415 = vsel %vm1209, %v1414, %v1413
    %v1416 = vrot.slane %v1404, 2
    %v1417 = vsel %vm1212, %v1416, %v1415
    %v1418 = vrot.slane %v1405, 1
    %v1419 = vsel %vm1215, %v1418, %v1417
    %v1420 = vpack.c.b16 %v1419, %v1419
    %v1438 = vunpack.c.l.b16 %v1374
    %v1439 = vunpack.c.l.b16 %v1375
    %v1440 = vunpack.c.l.b16 %v1376
    %v1441 = vunpack.c.l.b16 %v1377
    %v1442 = vunpack.c.l.b16 %v1378
    %v1443 = vunpack.c.l.b16 %v1379
    %v1444 = vunpack.c.l.b16 %v1380
    %v1445 = vunpack.c.l.b16 %v1381
    %v1446 = vunpack.c.l.b16 %v1382
    %v1447 = vunpack.c.l.b16 %v1383
    %v1448 = vunpack.c.l.b16 %v1384
    %v1449 = vunpack.c.l.b16 %v1385
    %v1450 = vunpack.c.l.b16 %v1386
    %v1451 = vunpack.c.l.b16 %v1387
    %v1452 = vunpack.c.l.b16 %v1388
    %v1453 = vunpack.c.l.b16 %v1389
    %v1454 = vpack.c.b16 %v1439, %v1438
    %v1455 = vpack.c.b16 %v1441, %v1440
    %v1456 = vpack.c.b16 %v1443, %v1442
    %v1457 = vpack.c.b16 %v1445, %v1444
    %v1458 = vpack.c.b16 %v1447, %v1446
    %v1459 = vpack.c.b16 %v1449, %v1448
    %v1460 = vpack.c.b16 %v1451, %v1450
    %v1461 = vpack.c.b16 %v1453, %v1452
    %1470 = vmatpush.bf16.msra.mxu0 %v1461
    %1471 = vmatpush.bf16.msra.mxu0 %v1460
    %1472 = vmatpush.bf16.msra.mxu0 %v1459
    %1473 = vmatpush.bf16.msra.mxu0 %v1458
    %1474 = vmatpush.bf16.msra.mxu0 %v1457
    %1475 = vmatpush.bf16.msra.mxu0 %v1456
    %1476 = vmatpush.bf16.msra.mxu0 %v1455
    %1477 = vmatpush.bf16.msra.mxu0 %v1454
    %1478 = vmatmul.bf16.gmra.mxu0 %v1420
    %v1479 = vpop.f32.mrf.mxu0
    %v1480 = vadd.f32 0.0, %v1479
    %v1481 = vpop.f32.mrf.mxu0
    %1482 = vdwg.mxu0
    %v1483 = vadd.f32 %v1370, %v1480
    %v1484 = vld [vmem:[%s5] sm:$0x1]
    %v1486 = vperm.slane %v1484, 0
    %v1488 = vadd.f32 %v1483, %v1486
    %1489 = vst [vmem:[#allocation10] sm:$0xff] %v1488
    // Predicated region
    $region42: #{tpu_custom_call.1} parent=1 // pred_check
      _
    $region43: #{tpu_custom_call.1} parent=1 // pred_check_branch
      %1491 = sbr.rel (0) target = $region45
    $region44: #{tpu_custom_call.1} parent=1 // pred_region
      %1493 = vsyncadd [#allocation4], 0
      %s1495 = sshll.u32 [#allocation10], 4
      %s1496 = int_to_ptr.vmem [resolvable:$true] %s1495
      %s1497 = sshll.u32 %s6, 4
      %s1498 = int_to_ptr.hbm [resolvable:$true] %s1497
      %1500 = dma.vmem_to_hbm [thread:$0]  %s1496, 128, %s1498, [#allocation4]
    $region45: #{tpu_custom_call.1} parent=1 // pred_fallthru
      _
    // Predicated region
    $region46: #{tpu_custom_call.1} parent=1 // pred_check
      _
    $region47: #{tpu_custom_call.1} parent=1 // pred_check_branch
      %1502 = sbr.rel (0) target = $region49
    $region48: #{tpu_custom_call.1} parent=1 // pred_region
      %1504 = dma.done [#allocation4], 128
    $region49: #{tpu_custom_call.1} parent=1 // pred_fallthru
      _
    %1505 = vsyncpa [#allocation3], 1
    %1506 = vsyncpa [#allocation6], 1
    %1507 = vsyncpa [#allocation9], 1
    %1508 = vsyncpa [#allocation4], 1

</llo_original>
